<compile_context>
chip_gen: v6e
topology: v6e:2x2x1
jax: 0.10.0
libtpu: 0.0.40
codegen_flags: <defaults>
</compile_context>

<pallas_src>
import functools

import jax
import jax.numpy as jnp
from jax.experimental import pallas as pl
from jax.experimental.pallas import tpu as pltpu

# contract dim 0 of both operands:  (K, M) x (K, N) -> (M, N)
_CONTRACT_DIM0 = (((0,), (0,)), ((), ()))
_MIB = 1024 * 1024


def _round_up(x, m):
    return (x + m - 1) // m * m


def _vmem_capacity_bytes():
    try:
        info = pltpu.get_tpu_info()
        return int(getattr(info, "vmem_capacity_bytes", 128 * _MIB))
    except Exception:
        return 128 * _MIB


def _pick_tiles(n_points, tn, n_splits):
    """Choose (TN, N_pad, tiles_per_split) with N_pad = n_splits * tiles * TN."""
    if n_splits == 1 and n_points <= tn:
        tn_sel = _round_up(n_points, 8)          # single full-extent point tile
        return tn_sel, tn_sel, 1
    n_tiles = max(n_splits, pl.cdiv(n_points, tn))
    n_tiles = _round_up(n_tiles, n_splits)
    tn_sel = _round_up(pl.cdiv(n_points, n_tiles), 128)   # lane-aligned tile
    return tn_sel, tn_sel * n_tiles, n_tiles // n_splits


# ---------------------------------------------------------------------------
# Kernel A: shared MLP + running max over point tiles (point-major compute so
# the global-feature accumulator is lane-dense (1, d)).  Used by both heads;
# the classification head additionally stores the per-point (TN, d) feature.
# Grid: (batch, core_split, point_tile).
# ---------------------------------------------------------------------------
def _feat_max_kernel(x_ref, w1_ref, b1_ref, w2_ref, b2_ref, w3_ref, b3_ref,
                     *out_refs, store_perpoint):
    if store_perpoint:
        pp_ref, g_ref = out_refs
    else:
        (g_ref,) = out_refs

    n = pl.program_id(2)
    x = x_ref[0]                                     # (3, TN) bf16, channel-major

    # conv1 (1x1) + folded bn1 + relu: contract the 3 coords -> (TN, 64), f32 acc
    h1 = jax.lax.dot_general(x, w1_ref[...], _CONTRACT_DIM0,
                             preferred_element_type=jnp.float32) + b1_ref[...]
    h1 = jnp.maximum(h1, 0.0)

    # conv2 + bn2 + relu -> (TN, 128); bf16 operands, f32 accumulate
    h2 = jnp.dot(h1.astype(jnp.bfloat16), w2_ref[...],
                 preferred_element_type=jnp.float32) + b2_ref[...]
    h2 = jnp.maximum(h2, 0.0)

    # conv3 + bn3 (no relu) -> (TN, d)
    h3 = jnp.dot(h2.astype(jnp.bfloat16), w3_ref[...],
                 preferred_element_type=jnp.float32) + b3_ref[...]

    if store_perpoint:
        pp_ref[0] = h3.astype(pp_ref.dtype)          # per-point feature store

    # No masking: padded points are edge-replicated real points, so they can
    # never change the max.
    tile_max = jnp.max(h3, axis=0, keepdims=True)    # (1, d), lane-dense

    @pl.when(n == 0)
    def _init():
        g_ref[0, 0] = tile_max                       # first tile: direct write

    @pl.when(n != 0)
    def _update():
        g_ref[0, 0] = jnp.maximum(g_ref[0, 0], tile_max)


# ---------------------------------------------------------------------------
# Kernel B (segmentation epilogue): writes one (d+64, TN) tile of the output
# slab.  Channels [0, d) = broadcast global feature, channels [d, d+64) =
# conv1 local feature (recomputed: the K=3 matmul is ~free compared with
# writing and re-reading the 64-channel feature through HBM).
# Grid: (batch, point_tile).
# ---------------------------------------------------------------------------
def _seg_concat_kernel(x_ref, w1_ref, b1_ref, g_ref, out_ref, *, d):
    x = x_ref[0]                                     # (3, TN) bf16
    h1 = jax.lax.dot_general(w1_ref[...], x, _CONTRACT_DIM0,
                             preferred_element_type=jnp.float32) + b1_ref[...]
    h1 = jnp.maximum(h1, 0.0)                        # (64, TN)
    tn = x.shape[-1]
    g_col = g_ref[0]                                 # (d, 1) f32, channel-major
    out_ref[0, :d, :] = jnp.broadcast_to(g_col, (d, tn)).astype(out_ref.dtype)
    out_ref[0, d:, :] = h1.astype(out_ref.dtype)


# ---------------------------------------------------------------------------
# Wrapper
# ---------------------------------------------------------------------------
def pointnet_feat(x, params, segmentation=False, *, tn=None, n_splits=None,
                  out_dtype=jnp.bfloat16):
    """x: (B, 3, N) float32.  params: BN-folded (W1, b1, W2, b2, W3, b3)."""
    W1, b1, W2, b2, W3, b3 = params
    B, C, N = x.shape
    H1 = W1.shape[1]     # 64
    H2 = W2.shape[1]     # 128
    d = W3.shape[1]

    vmem_cap = _vmem_capacity_bytes()
    if tn is None:
        # 64-MiB-VMEM generations (v7x) get a smaller point tile.
        tn = 2048 if vmem_cap <= 64 * _MIB else 4096
    if n_splits is None:
        # Split each batch's point range across cores only when the batch axis
        # alone cannot feed both TensorCores of a v7x chip.
        n_splits = 2 if B == 1 else 1

    TN, N_pad, tps = _pick_tiles(N, tn, n_splits)
    n_tiles = n_splits * tps

    # bf16 feeds the MXU at native rate and halves x / weight HBM+VMEM traffic.
    # Biases stay f32 (added after the f32 accumulate).
    x = x.astype(jnp.bfloat16)
    if N_pad != N:
        x = jnp.pad(x, ((0, 0), (0, 0), (0, N_pad - N)), mode="edge")
    W1b = W1.astype(jnp.bfloat16)
    W2b = W2.astype(jnp.bfloat16)
    W3b = W3.astype(jnp.bfloat16)
    b1r = jnp.reshape(b1, (1, H1)).astype(jnp.float32)
    b2r = jnp.reshape(b2, (1, H2)).astype(jnp.float32)
    b3r = jnp.reshape(b3, (1, d)).astype(jnp.float32)

    vmem_limit = int(min(vmem_cap * 3 // 4, 112 * _MIB))
    out_isz = jnp.dtype(out_dtype).itemsize
    w_bytes = 2 * (C * H1 + H1 * H2 + H2 * d) + 4 * (H1 + H2 + d)
    x_bytes = 2 * B * C * N_pad
    mlp_flops = 2 * B * N_pad * (C * H1 + H1 * H2 + H2 * d)

    x_spec = pl.BlockSpec((1, C, TN), lambda b, s, n: (b, 0, s * tps + n))
    weight_specs = [
        pl.BlockSpec(W1b.shape, lambda b, s, n: (0, 0)),
        pl.BlockSpec(b1r.shape, lambda b, s, n: (0, 0)),
        pl.BlockSpec(W2b.shape, lambda b, s, n: (0, 0)),
        pl.BlockSpec(b2r.shape, lambda b, s, n: (0, 0)),
        pl.BlockSpec(W3b.shape, lambda b, s, n: (0, 0)),
        pl.BlockSpec(b3r.shape, lambda b, s, n: (0, 0)),
    ]
    # Partial global max per (batch, split); trailing dims (1, d) keep the
    # block full-extent in the last two dims (layout-legal for any n_splits).
    g_shape = jax.ShapeDtypeStruct((B, n_splits, 1, d), jnp.float32)
    g_spec = pl.BlockSpec((1, 1, 1, d), lambda b, s, n: (b, s, 0, 0))
    cparams3 = pltpu.CompilerParams(
        dimension_semantics=("parallel", "parallel", "arbitrary"),
        vmem_limit_bytes=vmem_limit)
    grid3 = (B, n_splits, tps)

    if not segmentation:
        kernel = functools.partial(_feat_max_kernel, store_perpoint=True)
        out_shape = (
            jax.ShapeDtypeStruct((B, N_pad, d), out_dtype),   # per-point feature
            g_shape,                                          # partial global max
        )
        grid_spec = pltpu.PrefetchScalarGridSpec(
            num_scalar_prefetch=0, grid=grid3,
            in_specs=[x_spec] + weight_specs,
            out_specs=[
                pl.BlockSpec((1, TN, d), lambda b, s, n: (b, s * tps + n, 0)),
                g_spec,
            ])
        cost = pl.CostEstimate(
            flops=mlp_flops, transcendentals=0,
            bytes_accessed=x_bytes + w_bytes + out_isz * B * N_pad * d
            + 4 * B * n_splits * d)
        perpoint, gpart = pl.pallas_call(
            kernel, out_shape=out_shape, grid_spec=grid_spec,
            compiler_params=cparams3, cost_estimate=cost,
        )(x, W1b, b1r, W2b, b2r, W3b, b3r)
        gfeat = jnp.max(gpart[:, :, 0, :], axis=1)            # (B, d) f32
        if N_pad != N:
            perpoint = perpoint[:, :N, :]                     # only if padded
        return gfeat, perpoint

    # ---------------- segmentation head ----------------
    # Pass 1: global max only (lane-dense accumulator, no large HBM writes).
    kernel = functools.partial(_feat_max_kernel, store_perpoint=False)
    grid_spec = pltpu.PrefetchScalarGridSpec(
        num_scalar_prefetch=0, grid=grid3,
        in_specs=[x_spec] + weight_specs,
        out_specs=g_spec)
    cost = pl.CostEstimate(
        flops=mlp_flops, transcendentals=0,
        bytes_accessed=x_bytes + w_bytes + 4 * B * n_splits * d)
    gpart = pl.pallas_call(
        kernel, out_shape=g_shape, grid_spec=grid_spec,
        compiler_params=cparams3, cost_estimate=cost,
    )(x, W1b, b1r, W2b, b2r, W3b, b3r)
    g_col = jnp.max(gpart[:, :, 0, :], axis=1).reshape(B, d, 1)  # channel-major

    # Pass 2: write the (B, d+64, N_pad) slab directly (no wrapper-side
    # broadcast + concatenate).
    b1c = jnp.reshape(b1, (H1, 1)).astype(jnp.float32)
    kernel = functools.partial(_seg_concat_kernel, d=d)
    grid_spec = pltpu.PrefetchScalarGridSpec(
        num_scalar_prefetch=0, grid=(B, n_tiles),
        in_specs=[
            pl.BlockSpec((1, C, TN), lambda b, n: (b, 0, n)),
            pl.BlockSpec(W1b.shape, lambda b, n: (0, 0)),
            pl.BlockSpec(b1c.shape, lambda b, n: (0, 0)),
            pl.BlockSpec((1, d, 1), lambda b, n: (b, 0, 0)),
        ],
        out_specs=pl.BlockSpec((1, d + H1, TN), lambda b, n: (b, 0, n)))
    cost = pl.CostEstimate(
        flops=2 * B * N_pad * C * H1, transcendentals=0,
        bytes_accessed=x_bytes + 2 * C * H1 + 4 * (H1 + B * d)
        + out_isz * B * (d + H1) * N_pad)
    slab = pl.pallas_call(
        kernel,
        out_shape=jax.ShapeDtypeStruct((B, d + H1, N_pad), out_dtype),
        grid_spec=grid_spec,
        compiler_params=pltpu.CompilerParams(
            dimension_semantics=("parallel", "parallel"),
            vmem_limit_bytes=vmem_limit),
        cost_estimate=cost,
    )(x, W1b, b1c, g_col)
    if N_pad != N:
        slab = slab[:, :, :N]                                 # only if padded
    return slab


# ---------------------------------------------------------------------------
# Deterministic synthetic parameters (BatchNorm folded into the 1x1 convs).
# ---------------------------------------------------------------------------
def make_params(key, d=1024):
    dims = [(3, 64), (64, 128), (128, d)]
    eps = 1e-5
    params = []
    for i, (cin, cout) in enumerate(dims):
        ks = jax.random.split(jax.random.fold_in(key, i), 6)
        W = jax.random.normal(ks[0], (cin, cout), jnp.float32) / jnp.sqrt(cin)
        b = jax.random.normal(ks[1], (cout,), jnp.float32) * 0.1
        gamma = 1.0 + 0.1 * jax.random.normal(ks[2], (cout,), jnp.float32)
        beta = 0.1 * jax.random.normal(ks[3], (cout,), jnp.float32)
        mean = 0.1 * jax.random.normal(ks[4], (cout,), jnp.float32)
        var = 1.0 + 0.1 * jax.random.uniform(ks[5], (cout,), jnp.float32)
        scale = gamma / jnp.sqrt(var + eps)
        params += [W * scale[None, :], ((b - mean) * scale + beta).reshape(1, cout)]
    return tuple(params)


def ref_forward(x, params):
    """Pure-JAX f32 reference mirroring the PyTorch forward."""
    W1, b1, W2, b2, W3, b3 = params
    xt = jnp.transpose(x, (0, 2, 1))                 # (B, N, 3)
    h1 = jax.nn.relu(xt @ W1 + b1)                   # (B, N, 64)
    h2 = jax.nn.relu(h1 @ W2 + b2)                   # (B, N, 128)
    h3 = h2 @ W3 + b3                                # (B, N, d)
    g = jnp.max(h3, axis=1)                          # (B, d)
    return g, h3, h1


if __name__ == "__main__":
    # Small shapes consistent with the module: B=2 clouds of N=200 3-D points,
    # global feature dim d=256 (module default is 1024; shrunk for the demo).
    B, N, d = 2, 200, 256
    key = jax.random.PRNGKey(0)
    kx, kp = jax.random.split(key)
    x = jax.random.normal(kx, (B, 3, N), jnp.float32)
    params = make_params(kp, d=d)

    g_ref, pp_ref, h1_ref = ref_forward(x, params)

    # ---- classification head, default tiling (single full-extent tile) ----
    gfeat, perpoint = jax.block_until_ready(
        pointnet_feat(x, params, segmentation=False))
    assert gfeat.shape == (B, d) and perpoint.shape == (B, N, d)
    assert jnp.allclose(gfeat, g_ref, atol=5e-2, rtol=5e-2)
    assert jnp.allclose(perpoint.astype(jnp.float32), pp_ref, atol=5e-2, rtol=5e-2)

    # ---- exercise the multi-tile + core-split + edge-padded path (pure
    # correctness check of that code path; tn=128 is NOT a perf config) ----
    gfeat2, perpoint2 = jax.block_until_ready(
        pointnet_feat(x, params, segmentation=False, tn=128, n_splits=2))
    assert gfeat2.shape == (B, d) and perpoint2.shape == (B, N, d)
    assert jnp.allclose(gfeat2, g_ref, atol=5e-2, rtol=5e-2)
    assert jnp.allclose(perpoint2.astype(jnp.float32), pp_ref, atol=5e-2, rtol=5e-2)

    # ---- segmentation head: (B, d+64, N) ----
    seg_out = jax.block_until_ready(
        pointnet_feat(x, params, segmentation=True))
    assert seg_out.shape == (B, d + 64, N)
    seg_ref = jnp.concatenate(
        [jnp.broadcast_to(g_ref[:, :, None], (B, d, N)),
         jnp.transpose(h1_ref, (0, 2, 1))], axis=1)
    assert jnp.allclose(seg_out.astype(jnp.float32), seg_ref, atol=5e-2, rtol=5e-2)

    print("KERNEL_OK")
</pallas_src>

<mosaic_0001>
module attributes {stable_mosaic.version = 11 : i64} {
  func.func @_feat_max_kernel(%arg0: i32, %arg1: i32, %arg2: i32, %arg3: memref<1x3x200xbf16, #tpu.memory_space<vmem>>, %arg4: memref<3x64xbf16, #tpu.memory_space<vmem>>, %arg5: memref<1x64xf32, #tpu.memory_space<vmem>>, %arg6: memref<64x128xbf16, #tpu.memory_space<vmem>>, %arg7: memref<1x128xf32, #tpu.memory_space<vmem>>, %arg8: memref<128x256xbf16, #tpu.memory_space<vmem>>, %arg9: memref<1x256xf32, #tpu.memory_space<vmem>>, %arg10: memref<1x200x256xbf16, #tpu.memory_space<vmem>>, %arg11: memref<1x1x1x256xf32, #tpu.memory_space<vmem>>) attributes {dimension_semantics = [#tpu.dimension_semantics<parallel>, #tpu.dimension_semantics<parallel>, #tpu.dimension_semantics<arbitrary>], iteration_bounds = array<i64: 2, 1, 1>, scalar_prefetch = 0 : i64, scratch_operands = 0 : i64, tpu.core_type = #tpu.core_type<tc>, window_params = [{transform_indices = @transform_0, window_bounds = array<i64: 1, 3, 200>}, {pipeline_mode = #tpu.pipeline_mode<synchronous>, transform_indices = @transform_1, window_bounds = array<i64: 3, 64>}, {pipeline_mode = #tpu.pipeline_mode<synchronous>, transform_indices = @transform_2, window_bounds = array<i64: 1, 64>}, {pipeline_mode = #tpu.pipeline_mode<synchronous>, transform_indices = @transform_3, window_bounds = array<i64: 64, 128>}, {pipeline_mode = #tpu.pipeline_mode<synchronous>, transform_indices = @transform_4, window_bounds = array<i64: 1, 128>}, {pipeline_mode = #tpu.pipeline_mode<synchronous>, transform_indices = @transform_5, window_bounds = array<i64: 128, 256>}, {pipeline_mode = #tpu.pipeline_mode<synchronous>, transform_indices = @transform_6, window_bounds = array<i64: 1, 256>}, {transform_indices = @transform_7, window_bounds = array<i64: 1, 200, 256>}, {transform_indices = @transform_8, window_bounds = array<i64: 1, 1, 1, 256>}]} {
    %c0 = arith.constant 0 : index
    %c0_0 = arith.constant 0 : index
    %c0_1 = arith.constant 0 : index
    %0 = vector.load %arg3[%c0, %c0_0, %c0_1] : memref<1x3x200xbf16, #tpu.memory_space<vmem>>, vector<1x3x200xbf16>
    %1 = vector.shape_cast %0 : vector<1x3x200xbf16> to vector<3x200xbf16>
    %c0_2 = arith.constant 0 : index
    %c0_3 = arith.constant 0 : index
    %2 = vector.load %arg4[%c0_2, %c0_3] : memref<3x64xbf16, #tpu.memory_space<vmem>>, vector<3x64xbf16>
    %cst = arith.constant dense<0.000000e+00> : vector<200x64xf32>
    %3 = tpu.matmul %1, %2, %cst {dimension_numbers = #tpu.dot_dimension_numbers<[0], [0], [1], [1], [0, 1, 1, 1], [], []>} : vector<3x200xbf16>, vector<3x64xbf16>, vector<200x64xf32> -> vector<200x64xf32>
    %c0_4 = arith.constant 0 : index
    %c0_5 = arith.constant 0 : index
    %4 = vector.load %arg5[%c0_4, %c0_5] : memref<1x64xf32, #tpu.memory_space<vmem>>, vector<1x64xf32>
    %5 = vector.broadcast %4 : vector<1x64xf32> to vector<200x64xf32>
    %6 = arith.addf %3, %5 : vector<200x64xf32>
    %cst_6 = arith.constant 0.000000e+00 : f32
    %7 = vector.broadcast %cst_6 : f32 to vector<200x64xf32>
    %8 = arith.maximumf %6, %7 : vector<200x64xf32>
    %9 = arith.truncf %8 : vector<200x64xf32> to vector<200x64xbf16>
    %c0_7 = arith.constant 0 : index
    %c0_8 = arith.constant 0 : index
    %10 = vector.load %arg6[%c0_7, %c0_8] : memref<64x128xbf16, #tpu.memory_space<vmem>>, vector<64x128xbf16>
    %cst_9 = arith.constant dense<0.000000e+00> : vector<200x128xf32>
    %11 = tpu.matmul %9, %10, %cst_9 {dimension_numbers = #tpu.dot_dimension_numbers<[1], [0], [0], [1], [0, 0, 1, 1], [], []>} : vector<200x64xbf16>, vector<64x128xbf16>, vector<200x128xf32> -> vector<200x128xf32>
    %c0_10 = arith.constant 0 : index
    %c0_11 = arith.constant 0 : index
    %12 = vector.load %arg7[%c0_10, %c0_11] : memref<1x128xf32, #tpu.memory_space<vmem>>, vector<1x128xf32>
    %13 = vector.broadcast %12 : vector<1x128xf32> to vector<200x128xf32>
    %14 = arith.addf %11, %13 : vector<200x128xf32>
    %cst_12 = arith.constant 0.000000e+00 : f32
    %15 = vector.broadcast %cst_12 : f32 to vector<200x128xf32>
    %16 = arith.maximumf %14, %15 : vector<200x128xf32>
    %17 = arith.truncf %16 : vector<200x128xf32> to vector<200x128xbf16>
    %c0_13 = arith.constant 0 : index
    %c0_14 = arith.constant 0 : index
    %18 = vector.load %arg8[%c0_13, %c0_14] : memref<128x256xbf16, #tpu.memory_space<vmem>>, vector<128x256xbf16>
    %cst_15 = arith.constant dense<0.000000e+00> : vector<200x256xf32>
    %19 = tpu.matmul %17, %18, %cst_15 {dimension_numbers = #tpu.dot_dimension_numbers<[1], [0], [0], [1], [0, 0, 1, 1], [], []>} : vector<200x128xbf16>, vector<128x256xbf16>, vector<200x256xf32> -> vector<200x256xf32>
    %c0_16 = arith.constant 0 : index
    %c0_17 = arith.constant 0 : index
    %20 = vector.load %arg9[%c0_16, %c0_17] : memref<1x256xf32, #tpu.memory_space<vmem>>, vector<1x256xf32>
    %21 = vector.broadcast %20 : vector<1x256xf32> to vector<200x256xf32>
    %22 = arith.addf %19, %21 : vector<200x256xf32>
    %23 = arith.truncf %22 : vector<200x256xf32> to vector<200x256xbf16>
    %c0_18 = arith.constant 0 : index
    %c0_19 = arith.constant 0 : index
    %c0_20 = arith.constant 0 : index
    %24 = vector.load %arg10[%c0_18, %c0_19, %c0_20] : memref<1x200x256xbf16, #tpu.memory_space<vmem>>, vector<1x200x256xbf16>
    %25 = vector.shape_cast %24 : vector<1x200x256xbf16> to vector<200x256xbf16>
    %26 = vector.shape_cast %23 : vector<200x256xbf16> to vector<1x200x256xbf16>
    tpu.vector_store %arg10[%c0_18, %c0_19, %c0_20], %26 {strides = array<i32>} : memref<1x200x256xbf16, #tpu.memory_space<vmem>>, vector<1x200x256xbf16>,
    %cst_21 = arith.constant dense<0xFF800000> : vector<256xf32>
    %27 = vector.multi_reduction <maximumf>, %22, %cst_21 [0] : vector<200x256xf32> to vector<256xf32>
    %28 = vector.shape_cast %27 : vector<256xf32> to vector<1x256xf32>
    %c0_i32 = arith.constant 0 : i32
    %29 = arith.cmpi eq, %arg2, %c0_i32 : i32
    %30 = arith.extui %29 : i1 to i32
    %c0_i32_22 = arith.constant 0 : i32
    %31 = arith.cmpi ne, %30, %c0_i32_22 : i32
    scf.if %31 {
      %c0_25 = arith.constant 0 : index
      %c0_26 = arith.constant 0 : index
      %c0_27 = arith.constant 0 : index
      %c0_28 = arith.constant 0 : index
      %35 = vector.load %arg11[%c0_25, %c0_26, %c0_27, %c0_28] : memref<1x1x1x256xf32, #tpu.memory_space<vmem>>, vector<1x1x1x256xf32>
      %36 = vector.shape_cast %35 : vector<1x1x1x256xf32> to vector<1x256xf32>
      %37 = vector.shape_cast %28 : vector<1x256xf32> to vector<1x1x1x256xf32>
      tpu.vector_store %arg11[%c0_25, %c0_26, %c0_27, %c0_28], %37 {strides = array<i32>} : memref<1x1x1x256xf32, #tpu.memory_space<vmem>>, vector<1x1x1x256xf32>,
    } else {
    }
    %c0_i32_23 = arith.constant 0 : i32
    %32 = arith.cmpi ne, %arg2, %c0_i32_23 : i32
    %33 = arith.extui %32 : i1 to i32
    %c0_i32_24 = arith.constant 0 : i32
    %34 = arith.cmpi ne, %33, %c0_i32_24 : i32
    scf.if %34 {
      %c0_25 = arith.constant 0 : index
      %c0_26 = arith.constant 0 : index
      %c0_27 = arith.constant 0 : index
      %c0_28 = arith.constant 0 : index
      %35 = vector.load %arg11[%c0_25, %c0_26, %c0_27, %c0_28] : memref<1x1x1x256xf32, #tpu.memory_space<vmem>>, vector<1x1x1x256xf32>
      %36 = vector.shape_cast %35 : vector<1x1x1x256xf32> to vector<1x256xf32>
      %37 = arith.maximumf %36, %28 : vector<1x256xf32>
      %c0_29 = arith.constant 0 : index
      %c0_30 = arith.constant 0 : index
      %c0_31 = arith.constant 0 : index
      %c0_32 = arith.constant 0 : index
      %38 = vector.load %arg11[%c0_29, %c0_30, %c0_31, %c0_32] : memref<1x1x1x256xf32, #tpu.memory_space<vmem>>, vector<1x1x1x256xf32>
      %39 = vector.shape_cast %38 : vector<1x1x1x256xf32> to vector<1x256xf32>
      %40 = vector.shape_cast %37 : vector<1x256xf32> to vector<1x1x1x256xf32>
      tpu.vector_store %arg11[%c0_29, %c0_30, %c0_31, %c0_32], %40 {strides = array<i32>} : memref<1x1x1x256xf32, #tpu.memory_space<vmem>>, vector<1x1x1x256xf32>,
    } else {
    }
    return
  }
  func.func @transform_0(%arg0: i32, %arg1: i32, %arg2: i32) -> (i32, i32, i32) {
    %c1_i32 = arith.constant 1 : i32
    %0 = arith.muli %arg1, %c1_i32 : i32
    %1 = arith.addi %0, %arg2 : i32
    %c0_i32 = arith.constant 0 : i32
    %c0_i32_0 = arith.constant 0 : i32
    return %arg0, %c0_i32, %1 : i32, i32, i32
  }
  func.func @transform_1(%arg0: i32, %arg1: i32, %arg2: i32) -> (i32, i32) {
    %c0_i32 = arith.constant 0 : i32
    %c0_i32_0 = arith.constant 0 : i32
    %c0_i32_1 = arith.constant 0 : i32
    return %c0_i32, %c0_i32_0 : i32, i32
  }
  func.func @transform_2(%arg0: i32, %arg1: i32, %arg2: i32) -> (i32, i32) {
    %c0_i32 = arith.constant 0 : i32
    %c0_i32_0 = arith.constant 0 : i32
    %c0_i32_1 = arith.constant 0 : i32
    return %c0_i32, %c0_i32_0 : i32, i32
  }
  func.func @transform_3(%arg0: i32, %arg1: i32, %arg2: i32) -> (i32, i32) {
    %c0_i32 = arith.constant 0 : i32
    %c0_i32_0 = arith.constant 0 : i32
    %c0_i32_1 = arith.constant 0 : i32
    return %c0_i32, %c0_i32_0 : i32, i32
  }
  func.func @transform_4(%arg0: i32, %arg1: i32, %arg2: i32) -> (i32, i32) {
    %c0_i32 = arith.constant 0 : i32
    %c0_i32_0 = arith.constant 0 : i32
    %c0_i32_1 = arith.constant 0 : i32
    return %c0_i32, %c0_i32_0 : i32, i32
  }
  func.func @transform_5(%arg0: i32, %arg1: i32, %arg2: i32) -> (i32, i32) {
    %c0_i32 = arith.constant 0 : i32
    %c0_i32_0 = arith.constant 0 : i32
    %c0_i32_1 = arith.constant 0 : i32
    return %c0_i32, %c0_i32_0 : i32, i32
  }
  func.func @transform_6(%arg0: i32, %arg1: i32, %arg2: i32) -> (i32, i32) {
    %c0_i32 = arith.constant 0 : i32
    %c0_i32_0 = arith.constant 0 : i32
    %c0_i32_1 = arith.constant 0 : i32
    return %c0_i32, %c0_i32_0 : i32, i32
  }
  func.func @transform_7(%arg0: i32, %arg1: i32, %arg2: i32) -> (i32, i32, i32) {
    %c1_i32 = arith.constant 1 : i32
    %0 = arith.muli %arg1, %c1_i32 : i32
    %1 = arith.addi %0, %arg2 : i32
    %c0_i32 = arith.constant 0 : i32
    %c0_i32_0 = arith.constant 0 : i32
    return %arg0, %1, %c0_i32 : i32, i32, i32
  }
  func.func @transform_8(%arg0: i32, %arg1: i32, %arg2: i32) -> (i32, i32, i32, i32) {
    %c0_i32 = arith.constant 0 : i32
    %c0_i32_0 = arith.constant 0 : i32
    %c0_i32_1 = arith.constant 0 : i32
    return %arg0, %arg1, %c0_i32, %c0_i32_0 : i32, i32, i32, i32
  }
}

</mosaic_0001>

<llo_original>
// kernel: tpu_custom_call.1
$region0: #{tpu_custom_call.1}
  #allocation0 [shape = 'u32[]', space=smem, size = 0x4, offset = 0x4, fixed_abs, tag = 'smem constant byte address 0x4 - core index']
  #allocation1 [shape = 'u32[144,128]{1,0:T(1,128)}', space=vmem, size = 0x12000, scoped, tag = 'internal scratch']
  %s0 = inlined_call_operand.vmem [shape: bf16[2,3,200], index: 0, kind: input, shape index: {}]
  %s1 = inlined_call_operand.vmem [shape: bf16[3,64], index: 1, kind: input, shape index: {}]
  %s2 = inlined_call_operand.vmem [shape: f32[1,64], index: 2, kind: input, shape index: {}]
  %s3 = inlined_call_operand.hbm [shape: bf16[64,128], index: 3, kind: input, shape index: {}]
  %s4 = inlined_call_operand.vmem [shape: f32[1,128], index: 4, kind: input, shape index: {}]
  %s5 = inlined_call_operand.hbm [shape: bf16[128,256], index: 5, kind: input, shape index: {}]
  %s6 = inlined_call_operand.vmem [shape: f32[1,256], index: 6, kind: input, shape index: {}]
  %s7 = inlined_call_operand.hbm [shape: bf16[2,200,256], index: 7, kind: output, shape index: {0}]
  %s8 = inlined_call_operand.hbm [shape: f32[2,1,1,256], index: 8, kind: output, shape index: {1}]
  %9 = xla_tuple %s7, %s8
  %s10 = sld [smem:[#allocation0]]
  $region85: #{tpu_custom_call.1} parent=0
    _
  %s12 = ssub.s32 1, %s10
  %s13 = scalar_select 0, %s12, %s10
  $region1: #{tpu_custom_call.1} parent=0
    #allocation2 [shape = 'u8[16384]{0}', space=vmem, size = 0x4000, scoped, tag = 'input window, operand 3, single buffered']
    #allocation3 [shape = 's32[2]{0}', space=sflag, size = 0x8, scoped, tag = 'scoped memory for tpu_custom_call.1']
    #allocation4 [shape = 's32[2]{0}', space=sflag, size = 0x8, scoped, tag = 'scoped memory for tpu_custom_call.1']
    #allocation5 [shape = 'u8[65536]{0}', space=vmem, size = 0x10000, scoped, tag = 'input window, operand 5, single buffered']
    #allocation6 [shape = 's32[1]{0}', space=sflag, size = 0x4, scoped, tag = 'scoped memory for tpu_custom_call.1']
    #allocation7 [shape = 'u8[204800]{0}', space=vmem, size = 0x32000, scoped, tag = 'output window, operand 0']
    #allocation8 [shape = 'u8[2048]{0}', space=vmem, size = 0x800, scoped, tag = 'output window, operand 1']
    #allocation9 [shape = 's32[2]{0}', space=sflag, size = 0x8, scoped, tag = 'scoped memory for tpu_custom_call.1']
    %14 = vsyncpa [#allocation3], 0
    %15 = vsyncpa [#allocation6], 0
    %16 = vsyncpa [#allocation4], 0
    %s17 = scalar_lea.sflag [#allocation4], 1
    %18 = vsyncpa %s17, 0
    %19 = vsyncpa [#allocation9], 0
    %s20 = scalar_lea.sflag [#allocation9], 1
    %21 = vsyncpa %s20, 0
    loop: start=0, step=1, limit=4
    $region2: #{tpu_custom_call.1} parent=1 // loop_pre_header
      _
    $region3: #{tpu_custom_call.1} parent=1 // loop_header
      %s23 = sphi 0, %s27
      %p24 = scmp.ge.s32.totalorder %s23, 4
      %s30 = sphi 0, %s49
      %s31 = sphi 0, %s45
      %s32 = sphi 0, %s41
      %s33 = sphi 0, %s30
      %s34 = sphi 0, %s31
      %s35 = sphi 0, %s32
      %s36 = sphi 0, %s33
      %s37 = sphi 0, %s34
      %s38 = sphi 0, %s35
      %s56 = sphi 0, %s58
      %s59 = sphi 0, %s56
      %s60 = sphi 0, %s59
      %s76 = sphi 0, %s60
      %s80 = sphi 0, %s80
      %s82 = sphi 0, %s80
      %s83 = sphi 0, %s82
      %s97 = sphi 0, %s83
      %s101 = sphi 0, %s101
      %s103 = sphi 0, %s101
      %s104 = sphi 0, %s103
      %s118 = sphi 0, %s104
      %s122 = sphi 0, %s122
      %s124 = sphi 0, %s122
      %s125 = sphi 0, %s124
      %s139 = sphi 0, %s125
      %s143 = sphi 0, %s143
      %s145 = sphi 0, %s143
      %s146 = sphi 0, %s145
      %s160 = sphi 0, %s146
      %s164 = sphi 0, %s164
      %s166 = sphi 0, %s164
      %s167 = sphi 0, %s166
      %s181 = sphi 0, %s167
      %s185 = sphi 0, %s185
      %s187 = sphi 0, %s185
      %s188 = sphi 0, %s187
      %s202 = sphi 0, %s188
      %s212 = sphi 0, %s214
      %s215 = sphi 0, %s212
      %s216 = sphi 0, %s215
      %s232 = sphi 0, %s216
      %s240 = sphi 0, %s242
      %s243 = sphi 0, %s240
      %s244 = sphi 0, %s243
      %s260 = sphi 0, %s244
    $region4: #{tpu_custom_call.1} parent=1 // loop_header_branch
      %26 = sbr.rel (%p24) target = $region8
    $region5: #{tpu_custom_call.1} parent=1 // loop_body
      %s28 = ssub.s32 %s23, 1
      %s29 = ssub.s32 %s23, 2
      %s39 = sadd.s32 1, %s32
      %p40 = scmp.ge.s32.totalorder %s39, 1
      %s41 = scalar_select %p40, 0, %s39
      %s42 = sadd.s32 1, %s31
      %s43 = scalar_select %p40, %s42, %s31
      %p44 = scmp.ge.s32.totalorder %s43, 1
      %s45 = scalar_select %p44, 0, %s43
      %s46 = sadd.s32 1, %s30
      %s47 = scalar_select %p44, %s46, %s30
      %p48 = scmp.ge.s32.totalorder %s47, 2
      %s49 = scalar_select %p48, 0, %s47
      %s50 = sadd.s32 %s31, %s32
      %s51 = sadd.s32 %s45, %s41
      %s52 = ssub.s32 %s30, %s49
      %s53 = ssub.s32 %s50, %s51
      %s54 = sor.u32 %s52, %s53
      %p55 = scmp.eq.s32.totalorder %s54, 0
      %s57 = sadd.s32 %s56, 1
      %s58 = scalar_select %p55, %s56, %s57
      %p61 = pneg %p55
      %p62 = scmp.eq.s32.totalorder %s23, 1
      %p63 = por %p61, %p62
      %p64 = scmp.ne.s32.totalorder %s56, %s59
      %p65 = scmp.eq.s32.totalorder %s23, 0
      %p66 = por %p64, %p65
      %p67 = scmp.ne.s32.totalorder %s56, %s59
      %p68 = scmp.eq.s32.totalorder %s28, 1
      %p69 = por %p67, %p68
      %p70 = scmp.ne.s32.totalorder %s59, %s60
      %p71 = scmp.eq.s32.totalorder %s28, 0
      %p72 = por %p70, %p71
      %p73 = scmp.ne.s32.totalorder %s59, %s60
      %p74 = scmp.eq.s32.totalorder %s29, 1
      %p75 = por %p73, %p74
      %p77 = scmp.ne.s32.totalorder %s60, %s76
      %p78 = scmp.eq.s32.totalorder %s29, 0
      %p79 = por %p77, %p78
      %s81 = sadd.s32 %s80, 1
      %p84 = scmp.eq.s32.totalorder %s23, 1
      %p85 = scmp.ne.s32.totalorder %s80, %s82
      %p86 = scmp.eq.s32.totalorder %s23, 0
      %p87 = por %p85, %p86
      %p88 = scmp.ne.s32.totalorder %s80, %s82
      %p89 = scmp.eq.s32.totalorder %s28, 1
      %p90 = por %p88, %p89
      %p91 = scmp.ne.s32.totalorder %s82, %s83
      %p92 = scmp.eq.s32.totalorder %s28, 0
      %p93 = por %p91, %p92
      %p94 = scmp.ne.s32.totalorder %s82, %s83
      %p95 = scmp.eq.s32.totalorder %s29, 1
      %p96 = por %p94, %p95
      %p98 = scmp.ne.s32.totalorder %s83, %s97
      %p99 = scmp.eq.s32.totalorder %s29, 0
      %p100 = por %p98, %p99
      %s102 = sadd.s32 %s101, 1
      %p105 = scmp.eq.s32.totalorder %s23, 1
      %p106 = scmp.ne.s32.totalorder %s101, %s103
      %p107 = scmp.eq.s32.totalorder %s23, 0
      %p108 = por %p106, %p107
      %p109 = scmp.ne.s32.totalorder %s101, %s103
      %p110 = scmp.eq.s32.totalorder %s28, 1
      %p111 = por %p109, %p110
      %p112 = scmp.ne.s32.totalorder %s103, %s104
      %p113 = scmp.eq.s32.totalorder %s28, 0
      %p114 = por %p112, %p113
      %p115 = scmp.ne.s32.totalorder %s103, %s104
      %p116 = scmp.eq.s32.totalorder %s29, 1
      %p117 = por %p115, %p116
      %p119 = scmp.ne.s32.totalorder %s104, %s118
      %p120 = scmp.eq.s32.totalorder %s29, 0
      %p121 = por %p119, %p120
      %s123 = sadd.s32 %s122, 1
      %p126 = scmp.eq.s32.totalorder %s23, 1
      %p127 = scmp.ne.s32.totalorder %s122, %s124
      %p128 = scmp.eq.s32.totalorder %s23, 0
      %p129 = por %p127, %p128
      %p130 = scmp.ne.s32.totalorder %s122, %s124
      %p131 = scmp.eq.s32.totalorder %s28, 1
      %p132 = por %p130, %p131
      %p133 = scmp.ne.s32.totalorder %s124, %s125
      %p134 = scmp.eq.s32.totalorder %s28, 0
      %p135 = por %p133, %p134
      %p136 = scmp.ne.s32.totalorder %s124, %s125
      %p137 = scmp.eq.s32.totalorder %s29, 1
      %p138 = por %p136, %p137
      %p140 = scmp.ne.s32.totalorder %s125, %s139
      %p141 = scmp.eq.s32.totalorder %s29, 0
      %p142 = por %p140, %p141
      %s144 = sadd.s32 %s143, 1
      %p147 = scmp.eq.s32.totalorder %s23, 1
      %p148 = scmp.ne.s32.totalorder %s143, %s145
      %p149 = scmp.eq.s32.totalorder %s23, 0
      %p150 = por %p148, %p149
      %p151 = scmp.ne.s32.totalorder %s143, %s145
      %p152 = scmp.eq.s32.totalorder %s28, 1
      %p153 = por %p151, %p152
      %p154 = scmp.ne.s32.totalorder %s145, %s146
      %p155 = scmp.eq.s32.totalorder %s28, 0
      %p156 = por %p154, %p155
      %p157 = scmp.ne.s32.totalorder %s145, %s146
      %p158 = scmp.eq.s32.totalorder %s29, 1
      %p159 = por %p157, %p158
      %p161 = scmp.ne.s32.totalorder %s146, %s160
      %p162 = scmp.eq.s32.totalorder %s29, 0
      %p163 = por %p161, %p162
      %s165 = sadd.s32 %s164, 1
      %p168 = scmp.eq.s32.totalorder %s23, 1
      %p169 = scmp.ne.s32.totalorder %s164, %s166
      %p170 = scmp.eq.s32.totalorder %s23, 0
      %p171 = por %p169, %p170
      %p172 = scmp.ne.s32.totalorder %s164, %s166
      %p173 = scmp.eq.s32.totalorder %s28, 1
      %p174 = por %p172, %p173
      %p175 = scmp.ne.s32.totalorder %s166, %s167
      %p176 = scmp.eq.s32.totalorder %s28, 0
      %p177 = por %p175, %p176
      %p178 = scmp.ne.s32.totalorder %s166, %s167
      %p179 = scmp.eq.s32.totalorder %s29, 1
      %p180 = por %p178, %p179
      %p182 = scmp.ne.s32.totalorder %s167, %s181
      %p183 = scmp.eq.s32.totalorder %s29, 0
      %p184 = por %p182, %p183
      %s186 = sadd.s32 %s185, 1
      %p189 = scmp.eq.s32.totalorder %s23, 1
      %p190 = scmp.ne.s32.totalorder %s185, %s187
      %p191 = scmp.eq.s32.totalorder %s23, 0
      %p192 = por %p190, %p191
      %p193 = scmp.ne.s32.totalorder %s185, %s187
      %p194 = scmp.eq.s32.totalorder %s28, 1
      %p195 = por %p193, %p194
      %p196 = scmp.ne.s32.totalorder %s187, %s188
      %p197 = scmp.eq.s32.totalorder %s28, 0
      %p198 = por %p196, %p197
      %p199 = scmp.ne.s32.totalorder %s187, %s188
      %p200 = scmp.eq.s32.totalorder %s29, 1
      %p201 = por %p199, %p200
      %p203 = scmp.ne.s32.totalorder %s188, %s202
      %p204 = scmp.eq.s32.totalorder %s29, 0
      %p205 = por %p203, %p204
      %s206 = sadd.s32 %s31, %s32
      %s207 = sadd.s32 %s45, %s41
      %s208 = ssub.s32 %s30, %s49
      %s209 = ssub.s32 %s206, %s207
      %s210 = sor.u32 %s208, %s209
      %p211 = scmp.eq.s32.totalorder %s210, 0
      %s213 = sadd.s32 %s212, 1
      %s214 = scalar_select %p211, %s212, %s213
      %p217 = pneg %p211
      %p218 = scmp.eq.s32.totalorder %s23, 1
      %p219 = por %p217, %p218
      %p220 = scmp.ne.s32.totalorder %s212, %s215
      %p221 = scmp.eq.s32.totalorder %s23, 0
      %p222 = por %p220, %p221
      %p223 = scmp.ne.s32.totalorder %s212, %s215
      %p224 = scmp.eq.s32.totalorder %s28, 1
      %p225 = por %p223, %p224
      %p226 = scmp.ne.s32.totalorder %s215, %s216
      %p227 = scmp.eq.s32.totalorder %s28, 0
      %p228 = por %p226, %p227
      %p229 = scmp.ne.s32.totalorder %s215, %s216
      %p230 = scmp.eq.s32.totalorder %s29, 1
      %p231 = por %p229, %p230
      %p233 = scmp.ne.s32.totalorder %s216, %s232
      %p234 = scmp.eq.s32.totalorder %s29, 0
      %p235 = por %p233, %p234
      %s236 = ssub.s32 %s30, %s49
      %s237 = ssub.s32 %s31, %s45
      %s238 = sor.u32 %s236, %s237
      %p239 = scmp.eq.s32.totalorder %s238, 0
      %s241 = sadd.s32 %s240, 1
      %s242 = scalar_select %p239, %s240, %s241
      %p245 = pneg %p239
      %p246 = scmp.eq.s32.totalorder %s23, 1
      %p247 = por %p245, %p246
      %p248 = scmp.ne.s32.totalorder %s240, %s243
      %p249 = scmp.eq.s32.totalorder %s23, 0
      %p250 = por %p248, %p249
      %p251 = scmp.ne.s32.totalorder %s240, %s243
      %p252 = scmp.eq.s32.totalorder %s28, 1
      %p253 = por %p251, %p252
      %p254 = scmp.ne.s32.totalorder %s243, %s244
      %p255 = scmp.eq.s32.totalorder %s28, 0
      %p256 = por %p254, %p255
      %p257 = scmp.ne.s32.totalorder %s243, %s244
      %p258 = scmp.eq.s32.totalorder %s29, 1
      %p259 = por %p257, %p258
      %p261 = scmp.ne.s32.totalorder %s244, %s260
      %p262 = scmp.eq.s32.totalorder %s29, 0
      %p263 = por %p261, %p262
      %p264 = scmp.le.s32.totalorder 1, %s23
      %p265 = scmp.lt.s32.totalorder %s23, 3
      %p266 = pnand %p264, %p265
      %p267 = pneg %p266
      // Predicated region
      $region9: #{tpu_custom_call.1} parent=5 // pred_check
        _
      $region10: #{tpu_custom_call.1} parent=5 // pred_check_branch
        %269 = sbr.rel (%p266) target = $region12
      $region11: #{tpu_custom_call.1} parent=5 // pred_region
        %s270 = ssub.s32 %s23, 1
        // Predicated region
        $region13: #{tpu_custom_call.1} parent=11 // pred_check
          %p271 = pneg %p93
        $region14: #{tpu_custom_call.1} parent=11 // pred_check_branch
          %273 = sbr.rel (%p271) target = $region16
        $region15: #{tpu_custom_call.1} parent=11 // pred_region
          _
        $region16: #{tpu_custom_call.1} parent=11 // pred_fallthru
          _
        // Predicated region
        $region17: #{tpu_custom_call.1} parent=11 // pred_check
          %p274 = pneg %p114
        $region18: #{tpu_custom_call.1} parent=11 // pred_check_branch
          %276 = sbr.rel (%p274) target = $region20
        $region19: #{tpu_custom_call.1} parent=11 // pred_region
          _
        $region20: #{tpu_custom_call.1} parent=11 // pred_fallthru
          _
        // Predicated region
        $region21: #{tpu_custom_call.1} parent=11 // pred_check
          %p277 = pneg %p135
        $region22: #{tpu_custom_call.1} parent=11 // pred_check_branch
          %279 = sbr.rel (%p277) target = $region24
        $region23: #{tpu_custom_call.1} parent=11 // pred_region
          %s281 = ssub.s32 512, 512
          %282 = vsyncadd [#allocation3], %s281
          %s283 = sshll.u32 [#allocation2], 4
          %s284 = int_to_ptr.vmem [resolvable:$true] %s283
          %289 = dma.hbm_to_vmem [thread:$0]  %s3, 512, %s284, [#allocation3], 64, 64, 4
        $region24: #{tpu_custom_call.1} parent=11 // pred_fallthru
          _
        // Predicated region
        $region25: #{tpu_custom_call.1} parent=11 // pred_check
          %p290 = pneg %p156
        $region26: #{tpu_custom_call.1} parent=11 // pred_check_branch
          %292 = sbr.rel (%p290) target = $region28
        $region27: #{tpu_custom_call.1} parent=11 // pred_region
          _
        $region28: #{tpu_custom_call.1} parent=11 // pred_fallthru
          _
        // Predicated region
        $region29: #{tpu_custom_call.1} parent=11 // pred_check
          %p293 = pneg %p177
        $region30: #{tpu_custom_call.1} parent=11 // pred_check_branch
          %295 = sbr.rel (%p293) target = $region32
        $region31: #{tpu_custom_call.1} parent=11 // pred_region
          %s297 = ssub.s32 2048, 2048
          %298 = vsyncadd [#allocation6], %s297
          %s299 = sshll.u32 [#allocation5], 4
          %s300 = int_to_ptr.vmem [resolvable:$true] %s299
          %305 = dma.hbm_to_vmem [thread:$0]  %s5, 2048, %s300, [#allocation6], 128, 128, 8
        $region32: #{tpu_custom_call.1} parent=11 // pred_fallthru
          _
        // Predicated region
        $region33: #{tpu_custom_call.1} parent=11 // pred_check
          %p306 = pneg %p198
        $region34: #{tpu_custom_call.1} parent=11 // pred_check_branch
          %308 = sbr.rel (%p306) target = $region36
        $region35: #{tpu_custom_call.1} parent=11 // pred_region
          _
        $region36: #{tpu_custom_call.1} parent=11 // pred_fallthru
          _
      $region12: #{tpu_custom_call.1} parent=5 // pred_fallthru
        _
      %p309 = scmp.lt.s32.totalorder %s23, 2
      // Predicated region
      $region37: #{tpu_custom_call.1} parent=5 // pred_check
        %p310 = pneg %p309
      $region38: #{tpu_custom_call.1} parent=5 // pred_check_branch
        %312 = sbr.rel (%p310) target = $region40
      $region39: #{tpu_custom_call.1} parent=5 // pred_region
        // Predicated region
        $region41: #{tpu_custom_call.1} parent=39 // pred_check
          %p313 = pneg %p66
        $region42: #{tpu_custom_call.1} parent=39 // pred_check_branch
          %315 = sbr.rel (%p313) target = $region44
        $region43: #{tpu_custom_call.1} parent=39 // pred_region
          %s316 = sadd.s32 %s31, %s32
          %s317 = smul.u32 2, %s316
          %p318 = scmp.lt.s32.totalorder %s30, 1
          %s319 = scalar_select %p318, %s30, 1
          %p320 = scmp.lt.s32.totalorder %s317, 1
          %s321 = scalar_select %p320, %s317, 1
          %s322 = smul.addr %s319, 2
          %s323 = sadd.s32 %s321, %s322
          %s324 = smul.addr %s323, 2
          %s325 = scalar_lea.vmem %s0, %s324
          %s326 = sadd.s32 %s31, %s32
          %s327 = smul.u32 2, %s326
        $region44: #{tpu_custom_call.1} parent=39 // pred_fallthru
          _
      $region40: #{tpu_custom_call.1} parent=5 // pred_fallthru
        _
      %p328 = scmp.le.s32.totalorder 1, %s23
      %p329 = scmp.lt.s32.totalorder %s23, 3
      %p330 = pnand %p328, %p329
      %p331 = pneg %p330
      // Predicated region
      $region45: #{tpu_custom_call.1} parent=5 // pred_check
        _
      $region46: #{tpu_custom_call.1} parent=5 // pred_check_branch
        %333 = sbr.rel (%p330) target = $region48
      $region47: #{tpu_custom_call.1} parent=5 // pred_region
        %s334 = ssub.s32 %s23, 1
        // Predicated region
        $region49: #{tpu_custom_call.1} parent=47 // pred_check
          %p335 = pneg %p135
        $region50: #{tpu_custom_call.1} parent=47 // pred_check_branch
          %337 = sbr.rel (%p335) target = $region52
        $region51: #{tpu_custom_call.1} parent=47 // pred_region
          %338 = dma.done [#allocation3], 512
        $region52: #{tpu_custom_call.1} parent=47 // pred_fallthru
          _
        // Predicated region
        $region53: #{tpu_custom_call.1} parent=47 // pred_check
          %p339 = pneg %p177
        $region54: #{tpu_custom_call.1} parent=47 // pred_check_branch
          %341 = sbr.rel (%p339) target = $region56
        $region55: #{tpu_custom_call.1} parent=47 // pred_region
          %342 = dma.done [#allocation6], 2048
        $region56: #{tpu_custom_call.1} parent=47 // pred_fallthru
          _
        %s343 = sadd.s32 %s34, %s35
        %s344 = smul.u32 2, %s343
        %p345 = scmp.lt.s32.totalorder %s33, 1
        %s346 = scalar_select %p345, %s33, 1
        %p347 = scmp.lt.s32.totalorder %s344, 1
        %s348 = scalar_select %p347, %s344, 1
        %s349 = smul.addr %s346, 2
        %s350 = sadd.s32 %s348, %s349
        %s351 = smul.addr %s350, 2
        %s352 = scalar_lea.vmem %s0, %s351
        %p353 = pneg %p72
        %p354 = pneg %p69
        %p355 = pneg %p93
        %p356 = pneg %p90
        %p357 = pneg %p114
        %p358 = pneg %p111
        %p359 = pneg %p135
        %p360 = pneg %p132
        %p361 = pneg %p156
        %p362 = pneg %p153
        %p363 = pneg %p177
        %p364 = pneg %p174
        %p365 = pneg %p198
        %p366 = pneg %p195
        %p367 = pneg %p228
        %p368 = pneg %p225
        %s369 = sand.u32 %s215, 1
        %s370 = scalar_lea.sflag [#allocation4], %s369
        %s371 = sand.u32 %s215, 1
        %s372 = smul.addr %s371, 200
        %s373 = scalar_lea.vmem [#allocation7], %s372
        %p374 = pneg %p256
        %p375 = pneg %p253
        %s376 = sand.u32 %s243, 1
        %s377 = scalar_lea.sflag [#allocation9], %s376
        %s378 = sand.u32 %s243, 1
        %s379 = smul.addr %s378, 2
        %s380 = scalar_lea.vmem [#allocation8], %s379
        %s381 = sadd.s32 %s34, %s35
        %s382 = smul.u32 2, %s381
        %p383 = scmp.lt.s32.totalorder %s33, 1
        %s384 = scalar_select %p383, %s33, 1
        %p385 = scmp.lt.s32.totalorder %s382, 1
        %s386 = scalar_select %p385, %s382, 1
        %s387 = smul.addr %s384, 2
        %s388 = sadd.s32 %s386, %s387
        %s389 = smul.addr %s388, 2
        %s390 = scalar_lea.vmem %s0, %s389
        %s391 = sadd.s32 %s34, %s35
        %s392 = smul.u32 2, %s391
        %s393 = sadd.s32 %s34, %s35
        %s394 = smul.u32 25, %s393
        %v396 = vld [vmem:[%s390] sm:$0xf]
        %v397 = vld [vmem:[%s1] sm:$0x3]
        %v398 = vld [vmem:[%s2] sm:$0x1]
        %v400 = vlaneseq
        %v401 = vshrl.u32 %v400, 7
        %v402 = vsub.s32 0, %v401
        %v403 = vrot.slane %v398, %v402
        %v407 = vunpack.c.l.s4 1983009808
        %v408 = vunpack.c.0.s8 %v407
        %v409 = vlaneseq
        %v410 = vshrl.u32 %v409, 7
        %v411 = vsub.s32 %v408, %v410
        %v412 = vrot.slane %v396, %v411
        %v413 = vcombine.high %v412, %v412
        %416 = vxpose.xlu0.c.b16.start [1/8] %v412, 128
        %417 = vxpose.xlu0.c.b16.cont [2/8] 0, 128
        %418 = vxpose.xlu0.c.b16.cont [3/8] 0, 128
        %419 = vxpose.xlu0.c.b16.cont [4/8] 0, 128
        %420 = vxpose.xlu0.c.b16.cont [5/8] 0, 128
        %421 = vxpose.xlu0.c.b16.cont [6/8] 0, 128
        %422 = vxpose.xlu0.c.b16.cont [7/8] 0, 128
        %423 = vxpose.xlu0.c.b16.end [8/8] 0, 128
        %v424 = vpop.trf.xlu0
        %v425 = vpop.trf.xlu0
        %v426 = vpop.trf.xlu0
        %v427 = vpop.trf.xlu0
        %v428 = vpop.trf.xlu0
        %v429 = vpop.trf.xlu0
        %v430 = vpop.trf.xlu0
        %v431 = vpop.trf.xlu0
        %432 = vxpose.xlu0.c.b16.start [1/8] %v413, 128
        %433 = vxpose.xlu0.c.b16.cont [2/8] 0, 128
        %434 = vxpose.xlu0.c.b16.cont [3/8] 0, 128
        %435 = vxpose.xlu0.c.b16.cont [4/8] 0, 128
        %436 = vxpose.xlu0.c.b16.cont [5/8] 0, 128
        %437 = vxpose.xlu0.c.b16.cont [6/8] 0, 128
        %438 = vxpose.xlu0.c.b16.cont [7/8] 0, 128
        %439 = vxpose.xlu0.c.b16.end [8/8] 0, 128
        %v440 = vpop.trf.xlu0
        %v441 = vpop.trf.xlu0
        %v442 = vpop.trf.xlu0
        %v443 = vpop.trf.xlu0
        %v444 = vpop.trf.xlu0
        %v445 = vpop.trf.xlu0
        %v446 = vpop.trf.xlu0
        %v447 = vpop.trf.xlu0
        %vm448 = vcmask 23552
        %v450 = vsel %vm448, %v424, 0
        %v453 = vsel %vm448, %v425, 0
        %v456 = vsel %vm448, %v426, 0
        %v459 = vsel %vm448, %v427, 0
        %v462 = vsel %vm448, %v428, 0
        %v465 = vsel %vm448, %v429, 0
        %v468 = vsel %vm448, %v430, 0
        %v471 = vsel %vm448, %v431, 0
        %v474 = vsel %vm448, %v440, 0
        %v477 = vsel %vm448, %v441, 0
        %v480 = vsel %vm448, %v442, 0
        %v483 = vsel %vm448, %v443, 0
        %v486 = vsel %vm448, %v444, 0
        %vm488 = vcmask 1040384
        %vm489 = vcmask 1041408
        %v490 = vsel %vm488, 4294967295, 65535
        %v491 = vsel %vm489, %v490, 0
        %v493 = vand.u32 %v397, %v491
        %495 = vmatprep.subr.bf16.mxu0 0
        %496 = vmatpush1.bf16.msra.mxu0 0
        %497 = vmatprep.subr.bf16.mxu0 0
        %498 = vmatpush1.bf16.msra.mxu0 0
        %499 = vmatprep.subr.bf16.mxu0 0
        %500 = vmatpush1.bf16.msra.mxu0 0
        %501 = vmatprep.subr.bf16.mxu0 0
        %502 = vmatpush1.bf16.msra.mxu0 0
        %503 = vmatprep.subr.bf16.mxu0 0
        %504 = vmatpush1.bf16.msra.mxu0 0
        %505 = vmatprep.subr.bf16.mxu0 0
        %506 = vmatpush1.bf16.msra.mxu0 0
        %507 = vmatprep.subr.bf16.mxu0 0
        %508 = vmatpush1.bf16.msra.mxu0 0
        %509 = vmatprep.subr.bf16.mxu0 0
        %510 = vmatpush1.bf16.msra.mxu0 %v493
        %511 = vmatprep.subr.bf16.mxu0 0
        %512 = vmatpush2.bf16.msra.mxu0 0
        %513 = vmatprep.subr.bf16.mxu0 0
        %514 = vmatpush2.bf16.msra.mxu0 0
        %515 = vmatprep.subr.bf16.mxu0 0
        %516 = vmatpush2.bf16.msra.mxu0 0
        %517 = vmatprep.subr.bf16.mxu0 0
        %518 = vmatpush2.bf16.msra.mxu0 0
        %519 = vmatprep.subr.bf16.mxu0 0
        %520 = vmatpush2.bf16.msra.mxu0 0
        %521 = vmatprep.subr.bf16.mxu0 0
        %522 = vmatpush2.bf16.msra.mxu0 0
        %523 = vmatprep.subr.bf16.mxu0 0
        %524 = vmatpush2.bf16.msra.mxu0 0
        %525 = vmatprep.subr.bf16.mxu0 0
        %526 = vmatpush2.bf16.msra.mxu0 0
        %527 = vmatprep.mubr.bf16.mxu0 0
        %528 = vmatmul.mubr.bf16.gmra.mxu0 %v450
        %v529 = vpop.f32.mrf.mxu0
        %v530 = vadd.f32 %v403, %v529
        %v531 = vpop.f32.mrf.mxu0
        %v532 = vpop.f32.mrf.mxu0
        %v533 = vadd.f32 %v403, %v532
        %v534 = vpop.f32.mrf.mxu0
        %535 = vmatprep.mubr.bf16.mxu0 0
        %536 = vmatmul.mubr.bf16.gmra.mxu0 %v453
        %v537 = vpop.f32.mrf.mxu0
        %v538 = vadd.f32 %v403, %v537
        %v539 = vpop.f32.mrf.mxu0
        %v540 = vpop.f32.mrf.mxu0
        %v541 = vadd.f32 %v403, %v540
        %v542 = vpop.f32.mrf.mxu0
        %543 = vmatprep.mubr.bf16.mxu0 0
        %544 = vmatmul.mubr.bf16.gmra.mxu0 %v456
        %v545 = vpop.f32.mrf.mxu0
        %v546 = vadd.f32 %v403, %v545
        %v547 = vpop.f32.mrf.mxu0
        %v548 = vpop.f32.mrf.mxu0
        %v549 = vadd.f32 %v403, %v548
        %v550 = vpop.f32.mrf.mxu0
        %551 = vmatprep.mubr.bf16.mxu0 0
        %552 = vmatmul.mubr.bf16.gmra.mxu0 %v459
        %v553 = vpop.f32.mrf.mxu0
        %v554 = vadd.f32 %v403, %v553
        %v555 = vpop.f32.mrf.mxu0
        %v556 = vpop.f32.mrf.mxu0
        %v557 = vadd.f32 %v403, %v556
        %v558 = vpop.f32.mrf.mxu0
        %559 = vmatprep.mubr.bf16.mxu0 0
        %560 = vmatmul.mubr.bf16.gmra.mxu0 %v462
        %v561 = vpop.f32.mrf.mxu0
        %v562 = vadd.f32 %v403, %v561
        %v563 = vpop.f32.mrf.mxu0
        %v564 = vpop.f32.mrf.mxu0
        %v565 = vadd.f32 %v403, %v564
        %v566 = vpop.f32.mrf.mxu0
        %567 = vmatprep.mubr.bf16.mxu0 0
        %568 = vmatmul.mubr.bf16.gmra.mxu0 %v465
        %v569 = vpop.f32.mrf.mxu0
        %v570 = vadd.f32 %v403, %v569
        %v571 = vpop.f32.mrf.mxu0
        %v572 = vpop.f32.mrf.mxu0
        %v573 = vadd.f32 %v403, %v572
        %v574 = vpop.f32.mrf.mxu0
        %575 = vmatprep.mubr.bf16.mxu0 0
        %576 = vmatmul.mubr.bf16.gmra.mxu0 %v468
        %v577 = vpop.f32.mrf.mxu0
        %v578 = vadd.f32 %v403, %v577
        %v579 = vpop.f32.mrf.mxu0
        %v580 = vpop.f32.mrf.mxu0
        %v581 = vadd.f32 %v403, %v580
        %v582 = vpop.f32.mrf.mxu0
        %583 = vmatprep.mubr.bf16.mxu0 0
        %584 = vmatmul.mubr.bf16.gmra.mxu0 %v471
        %v585 = vpop.f32.mrf.mxu0
        %v586 = vadd.f32 %v403, %v585
        %v587 = vpop.f32.mrf.mxu0
        %v588 = vpop.f32.mrf.mxu0
        %v589 = vadd.f32 %v403, %v588
        %v590 = vpop.f32.mrf.mxu0
        %591 = vmatprep.mubr.bf16.mxu0 0
        %592 = vmatmul.mubr.bf16.gmra.mxu0 %v474
        %v593 = vpop.f32.mrf.mxu0
        %v594 = vadd.f32 %v403, %v593
        %v595 = vpop.f32.mrf.mxu0
        %v596 = vpop.f32.mrf.mxu0
        %v597 = vadd.f32 %v403, %v596
        %v598 = vpop.f32.mrf.mxu0
        %599 = vmatprep.mubr.bf16.mxu0 0
        %600 = vmatmul.mubr.bf16.gmra.mxu0 %v477
        %v601 = vpop.f32.mrf.mxu0
        %v602 = vadd.f32 %v403, %v601
        %v603 = vpop.f32.mrf.mxu0
        %v604 = vpop.f32.mrf.mxu0
        %v605 = vadd.f32 %v403, %v604
        %v606 = vpop.f32.mrf.mxu0
        %607 = vmatprep.mubr.bf16.mxu0 0
        %608 = vmatmul.mubr.bf16.gmra.mxu0 %v480
        %v609 = vpop.f32.mrf.mxu0
        %v610 = vadd.f32 %v403, %v609
        %v611 = vpop.f32.mrf.mxu0
        %v612 = vpop.f32.mrf.mxu0
        %v613 = vadd.f32 %v403, %v612
        %v614 = vpop.f32.mrf.mxu0
        %615 = vmatprep.mubr.bf16.mxu0 0
        %616 = vmatmul.mubr.bf16.gmra.mxu0 %v483
        %v617 = vpop.f32.mrf.mxu0
        %v618 = vadd.f32 %v403, %v617
        %v619 = vpop.f32.mrf.mxu0
        %v620 = vpop.f32.mrf.mxu0
        %v621 = vadd.f32 %v403, %v620
        %v622 = vpop.f32.mrf.mxu0
        %623 = vmatprep.mubr.bf16.mxu0 0
        %624 = vmatmul.mubr.bf16.gmra.mxu0 %v486
        %v625 = vpop.f32.mrf.mxu0
        %v626 = vadd.f32 %v403, %v625
        %v627 = vpop.f32.mrf.mxu0
        %v628 = vpop.f32.mrf.mxu0
        %v629 = vpop.f32.mrf.mxu0
        %630 = vdwg.mxu0
        %v631 = vmax.f32 %v530, 0.0
        %v632 = vmax.f32 %v533, 0.0
        %v633 = vmax.f32 %v538, 0.0
        %v634 = vmax.f32 %v541, 0.0
        %v635 = vmax.f32 %v546, 0.0
        %v636 = vmax.f32 %v549, 0.0
        %v637 = vmax.f32 %v554, 0.0
        %v638 = vmax.f32 %v557, 0.0
        %v639 = vmax.f32 %v562, 0.0
        %v640 = vmax.f32 %v565, 0.0
        %v641 = vmax.f32 %v570, 0.0
        %v642 = vmax.f32 %v573, 0.0
        %v643 = vmax.f32 %v578, 0.0
        %v644 = vmax.f32 %v581, 0.0
        %v645 = vmax.f32 %v586, 0.0
        %v646 = vmax.f32 %v589, 0.0
        %v647 = vmax.f32 %v594, 0.0
        %v648 = vmax.f32 %v597, 0.0
        %v649 = vmax.f32 %v602, 0.0
        %v650 = vmax.f32 %v605, 0.0
        %v651 = vmax.f32 %v610, 0.0
        %v652 = vmax.f32 %v613, 0.0
        %v653 = vmax.f32 %v618, 0.0
        %v654 = vmax.f32 %v621, 0.0
        %v655 = vmax.f32 %v626, 0.0
        %v656 = vpack.c.bf16 %v632, %v631
        %v657 = vpack.c.bf16 %v634, %v633
        %v658 = vpack.c.bf16 %v636, %v635
        %v659 = vpack.c.bf16 %v638, %v637
        %v660 = vpack.c.bf16 %v640, %v639
        %v661 = vpack.c.bf16 %v642, %v641
        %v662 = vpack.c.bf16 %v644, %v643
        %v663 = vpack.c.bf16 %v646, %v645
        %v664 = vpack.c.bf16 %v648, %v647
        %v665 = vpack.c.bf16 %v650, %v649
        %v666 = vpack.c.bf16 %v652, %v651
        %v667 = vpack.c.bf16 %v654, %v653
        %v668 = vpack.c.bf16 %v655, %v655
        %v669 = vld [vmem:[#allocation2] sm:$0xf]
        %v670 = vld [vmem:[#allocation2 + $0x4] sm:$0xf]
        %v671 = vld [vmem:[#allocation2 + $0x8] sm:$0xf]
        %v672 = vld [vmem:[#allocation2 + $0xc] sm:$0xf]
        %v673 = vld [vmem:[#allocation2 + $0x10] sm:$0xf]
        %v674 = vld [vmem:[#allocation2 + $0x14] sm:$0xf]
        %v675 = vld [vmem:[#allocation2 + $0x18] sm:$0xf]
        %v676 = vld [vmem:[#allocation2 + $0x1c] sm:$0xf]
        %v677 = vld [vmem:[%s4] sm:$0x1]
        %v679 = vlaneseq
        %v680 = vshrl.u32 %v679, 7
        %v681 = vsub.s32 0, %v680
        %v682 = vrot.slane %v677, %v681
        %v692 = vunpack.c.l.b16 %v669
        %v693 = vunpack.c.l.b16 %v670
        %v694 = vunpack.c.l.b16 %v671
        %v695 = vunpack.c.l.b16 %v672
        %v696 = vunpack.c.l.b16 %v673
        %v697 = vunpack.c.l.b16 %v674
        %v698 = vunpack.c.l.b16 %v675
        %v699 = vunpack.c.l.b16 %v676
        %v700 = vpack.c.b16 %v693, %v692
        %v701 = vpack.c.b16 %v695, %v694
        %v702 = vpack.c.b16 %v697, %v696
        %v703 = vpack.c.b16 %v699, %v698
        %vm708 = vcmask 523264
        %v710 = vsel %vm708, %v656, 0
        %v713 = vsel %vm708, %v657, 0
        %v716 = vsel %vm708, %v658, 0
        %v719 = vsel %vm708, %v659, 0
        %v722 = vsel %vm708, %v660, 0
        %v725 = vsel %vm708, %v661, 0
        %v728 = vsel %vm708, %v662, 0
        %v731 = vsel %vm708, %v663, 0
        %v734 = vsel %vm708, %v664, 0
        %v737 = vsel %vm708, %v665, 0
        %v740 = vsel %vm708, %v666, 0
        %v743 = vsel %vm708, %v667, 0
        %v746 = vsel %vm708, %v668, 0
        %748 = vmatprep.subr.bf16.mxu0 0
        %749 = vmatpush1.bf16.msra.mxu0 0
        %750 = vmatprep.subr.bf16.mxu0 0
        %751 = vmatpush1.bf16.msra.mxu0 0
        %752 = vmatprep.subr.bf16.mxu0 0
        %753 = vmatpush1.bf16.msra.mxu0 0
        %754 = vmatprep.subr.bf16.mxu0 0
        %755 = vmatpush1.bf16.msra.mxu0 0
        %756 = vmatprep.subr.bf16.mxu0 0
        %757 = vmatpush1.bf16.msra.mxu0 %v703
        %758 = vmatprep.subr.bf16.mxu0 0
        %759 = vmatpush1.bf16.msra.mxu0 %v702
        %760 = vmatprep.subr.bf16.mxu0 0
        %761 = vmatpush1.bf16.msra.mxu0 %v701
        %762 = vmatprep.subr.bf16.mxu0 0
        %763 = vmatpush1.bf16.msra.mxu0 %v700
        %764 = vmatprep.subr.bf16.mxu0 0
        %765 = vmatpush2.bf16.msra.mxu0 0
        %766 = vmatprep.subr.bf16.mxu0 0
        %767 = vmatpush2.bf16.msra.mxu0 0
        %768 = vmatprep.subr.bf16.mxu0 0
        %769 = vmatpush2.bf16.msra.mxu0 0
        %770 = vmatprep.subr.bf16.mxu0 0
        %771 = vmatpush2.bf16.msra.mxu0 0
        %772 = vmatprep.subr.bf16.mxu0 0
        %773 = vmatpush2.bf16.msra.mxu0 0
        %774 = vmatprep.subr.bf16.mxu0 0
        %775 = vmatpush2.bf16.msra.mxu0 0
        %776 = vmatprep.subr.bf16.mxu0 0
        %777 = vmatpush2.bf16.msra.mxu0 0
        %778 = vmatprep.subr.bf16.mxu0 0
        %779 = vmatpush2.bf16.msra.mxu0 0
        %780 = vmatprep.mubr.bf16.mxu0 0
        %781 = vmatmul.mubr.bf16.gmra.mxu0 %v710
        %v782 = vpop.f32.mrf.mxu0
        %v783 = vadd.f32 %v682, %v782
        %v784 = vpop.f32.mrf.mxu0
        %v785 = vpop.f32.mrf.mxu0
        %v786 = vadd.f32 %v682, %v785
        %v787 = vpop.f32.mrf.mxu0
        %788 = vmatprep.mubr.bf16.mxu0 0
        %789 = vmatmul.mubr.bf16.gmra.mxu0 %v713
        %v790 = vpop.f32.mrf.mxu0
        %v791 = vadd.f32 %v682, %v790
        %v792 = vpop.f32.mrf.mxu0
        %v793 = vpop.f32.mrf.mxu0
        %v794 = vadd.f32 %v682, %v793
        %v795 = vpop.f32.mrf.mxu0
        %796 = vmatprep.mubr.bf16.mxu0 0
        %797 = vmatmul.mubr.bf16.gmra.mxu0 %v716
        %v798 = vpop.f32.mrf.mxu0
        %v799 = vadd.f32 %v682, %v798
        %v800 = vpop.f32.mrf.mxu0
        %v801 = vpop.f32.mrf.mxu0
        %v802 = vadd.f32 %v682, %v801
        %v803 = vpop.f32.mrf.mxu0
        %804 = vmatprep.mubr.bf16.mxu0 0
        %805 = vmatmul.mubr.bf16.gmra.mxu0 %v719
        %v806 = vpop.f32.mrf.mxu0
        %v807 = vadd.f32 %v682, %v806
        %v808 = vpop.f32.mrf.mxu0
        %v809 = vpop.f32.mrf.mxu0
        %v810 = vadd.f32 %v682, %v809
        %v811 = vpop.f32.mrf.mxu0
        %812 = vmatprep.mubr.bf16.mxu0 0
        %813 = vmatmul.mubr.bf16.gmra.mxu0 %v722
        %v814 = vpop.f32.mrf.mxu0
        %v815 = vadd.f32 %v682, %v814
        %v816 = vpop.f32.mrf.mxu0
        %v817 = vpop.f32.mrf.mxu0
        %v818 = vadd.f32 %v682, %v817
        %v819 = vpop.f32.mrf.mxu0
        %820 = vmatprep.mubr.bf16.mxu0 0
        %821 = vmatmul.mubr.bf16.gmra.mxu0 %v725
        %v822 = vpop.f32.mrf.mxu0
        %v823 = vadd.f32 %v682, %v822
        %v824 = vpop.f32.mrf.mxu0
        %v825 = vpop.f32.mrf.mxu0
        %v826 = vadd.f32 %v682, %v825
        %v827 = vpop.f32.mrf.mxu0
        %828 = vmatprep.mubr.bf16.mxu0 0
        %829 = vmatmul.mubr.bf16.gmra.mxu0 %v728
        %v830 = vpop.f32.mrf.mxu0
        %v831 = vadd.f32 %v682, %v830
        %v832 = vpop.f32.mrf.mxu0
        %v833 = vpop.f32.mrf.mxu0
        %v834 = vadd.f32 %v682, %v833
        %v835 = vpop.f32.mrf.mxu0
        %836 = vmatprep.mubr.bf16.mxu0 0
        %837 = vmatmul.mubr.bf16.gmra.mxu0 %v731
        %v838 = vpop.f32.mrf.mxu0
        %v839 = vadd.f32 %v682, %v838
        %v840 = vpop.f32.mrf.mxu0
        %v841 = vpop.f32.mrf.mxu0
        %v842 = vadd.f32 %v682, %v841
        %v843 = vpop.f32.mrf.mxu0
        %844 = vmatprep.mubr.bf16.mxu0 0
        %845 = vmatmul.mubr.bf16.gmra.mxu0 %v734
        %v846 = vpop.f32.mrf.mxu0
        %v847 = vadd.f32 %v682, %v846
        %v848 = vpop.f32.mrf.mxu0
        %v849 = vpop.f32.mrf.mxu0
        %v850 = vadd.f32 %v682, %v849
        %v851 = vpop.f32.mrf.mxu0
        %852 = vmatprep.mubr.bf16.mxu0 0
        %853 = vmatmul.mubr.bf16.gmra.mxu0 %v737
        %v854 = vpop.f32.mrf.mxu0
        %v855 = vadd.f32 %v682, %v854
        %v856 = vpop.f32.mrf.mxu0
        %v857 = vpop.f32.mrf.mxu0
        %v858 = vadd.f32 %v682, %v857
        %v859 = vpop.f32.mrf.mxu0
        %860 = vmatprep.mubr.bf16.mxu0 0
        %861 = vmatmul.mubr.bf16.gmra.mxu0 %v740
        %v862 = vpop.f32.mrf.mxu0
        %v863 = vadd.f32 %v682, %v862
        %v864 = vpop.f32.mrf.mxu0
        %v865 = vpop.f32.mrf.mxu0
        %v866 = vadd.f32 %v682, %v865
        %v867 = vpop.f32.mrf.mxu0
        %868 = vmatprep.mubr.bf16.mxu0 0
        %869 = vmatmul.mubr.bf16.gmra.mxu0 %v743
        %v870 = vpop.f32.mrf.mxu0
        %v871 = vadd.f32 %v682, %v870
        %v872 = vpop.f32.mrf.mxu0
        %v873 = vpop.f32.mrf.mxu0
        %v874 = vadd.f32 %v682, %v873
        %v875 = vpop.f32.mrf.mxu0
        %876 = vmatprep.mubr.bf16.mxu0 0
        %877 = vmatmul.mubr.bf16.gmra.mxu0 %v746
        %v878 = vpop.f32.mrf.mxu0
        %v879 = vadd.f32 %v682, %v878
        %v880 = vpop.f32.mrf.mxu0
        %v881 = vpop.f32.mrf.mxu0
        %v882 = vpop.f32.mrf.mxu0
        %883 = vdwg.mxu0
        %v884 = vmax.f32 %v783, 0.0
        %v885 = vmax.f32 %v786, 0.0
        %v886 = vmax.f32 %v791, 0.0
        %v887 = vmax.f32 %v794, 0.0
        %v888 = vmax.f32 %v799, 0.0
        %v889 = vmax.f32 %v802, 0.0
        %v890 = vmax.f32 %v807, 0.0
        %v891 = vmax.f32 %v810, 0.0
        %v892 = vmax.f32 %v815, 0.0
        %v893 = vmax.f32 %v818, 0.0
        %v894 = vmax.f32 %v823, 0.0
        %v895 = vmax.f32 %v826, 0.0
        %v896 = vmax.f32 %v831, 0.0
        %v897 = vmax.f32 %v834, 0.0
        %v898 = vmax.f32 %v839, 0.0
        %v899 = vmax.f32 %v842, 0.0
        %v900 = vmax.f32 %v847, 0.0
        %v901 = vmax.f32 %v850, 0.0
        %v902 = vmax.f32 %v855, 0.0
        %v903 = vmax.f32 %v858, 0.0
        %v904 = vmax.f32 %v863, 0.0
        %v905 = vmax.f32 %v866, 0.0
        %v906 = vmax.f32 %v871, 0.0
        %v907 = vmax.f32 %v874, 0.0
        %v908 = vmax.f32 %v879, 0.0
        %v909 = vpack.c.bf16 %v885, %v884
        %v910 = vpack.c.bf16 %v887, %v886
        %v911 = vpack.c.bf16 %v889, %v888
        %v912 = vpack.c.bf16 %v891, %v890
        %v913 = vpack.c.bf16 %v893, %v892
        %v914 = vpack.c.bf16 %v895, %v894
        %v915 = vpack.c.bf16 %v897, %v896
        %v916 = vpack.c.bf16 %v899, %v898
        %v917 = vpack.c.bf16 %v901, %v900
        %v918 = vpack.c.bf16 %v903, %v902
        %v919 = vpack.c.bf16 %v905, %v904
        %v920 = vpack.c.bf16 %v907, %v906
        %v921 = vpack.c.bf16 %v908, %v908
        %v922 = vld [vmem:[#allocation5] sm:$0xff]
        %v923 = vld [vmem:[#allocation5 + $0x8] sm:$0xff]
        %v924 = vld [vmem:[#allocation5 + $0x10] sm:$0xff]
        %v925 = vld [vmem:[#allocation5 + $0x18] sm:$0xff]
        %v926 = vld [vmem:[#allocation5 + $0x20] sm:$0xff]
        %v927 = vld [vmem:[#allocation5 + $0x28] sm:$0xff]
        %v928 = vld [vmem:[#allocation5 + $0x30] sm:$0xff]
        %v929 = vld [vmem:[#allocation5 + $0x38] sm:$0xff]
        %v930 = vld [vmem:[#allocation5 + $0x40] sm:$0xff]
        %v931 = vld [vmem:[#allocation5 + $0x48] sm:$0xff]
        %v932 = vld [vmem:[#allocation5 + $0x50] sm:$0xff]
        %v933 = vld [vmem:[#allocation5 + $0x58] sm:$0xff]
        %v934 = vld [vmem:[#allocation5 + $0x60] sm:$0xff]
        %v935 = vld [vmem:[#allocation5 + $0x68] sm:$0xff]
        %v936 = vld [vmem:[#allocation5 + $0x70] sm:$0xff]
        %v937 = vld [vmem:[#allocation5 + $0x78] sm:$0xff]
        %v938 = vld [vmem:[%s6] sm:$0x3]
        %v940 = vlaneseq
        %v941 = vshrl.u32 %v940, 7
        %v942 = vsub.s32 0, %v941
        %v943 = vrot.slane %v938, %v942
        %v944 = vlaneseq
        %v945 = vshrl.u32 %v944, 7
        %v946 = vsub.s32 1, %v945
        %v947 = vrot.slane %v938, %v946
        %v966 = vunpack.c.l.b16 %v922
        %v967 = vunpack.c.h.b16 %v922
        %v968 = vunpack.c.l.b16 %v923
        %v969 = vunpack.c.h.b16 %v923
        %v970 = vunpack.c.l.b16 %v924
        %v971 = vunpack.c.h.b16 %v924
        %v972 = vunpack.c.l.b16 %v925
        %v973 = vunpack.c.h.b16 %v925
        %v974 = vunpack.c.l.b16 %v926
        %v975 = vunpack.c.h.b16 %v926
        %v976 = vunpack.c.l.b16 %v927
        %v977 = vunpack.c.h.b16 %v927
        %v978 = vunpack.c.l.b16 %v928
        %v979 = vunpack.c.h.b16 %v928
        %v980 = vunpack.c.l.b16 %v929
        %v981 = vunpack.c.h.b16 %v929
        %v982 = vunpack.c.l.b16 %v930
        %v983 = vunpack.c.h.b16 %v930
        %v984 = vunpack.c.l.b16 %v931
        %v985 = vunpack.c.h.b16 %v931
        %v986 = vunpack.c.l.b16 %v932
        %v987 = vunpack.c.h.b16 %v932
        %v988 = vunpack.c.l.b16 %v933
        %v989 = vunpack.c.h.b16 %v933
        %v990 = vunpack.c.l.b16 %v934
        %v991 = vunpack.c.h.b16 %v934
        %v992 = vunpack.c.l.b16 %v935
        %v993 = vunpack.c.h.b16 %v935
        %v994 = vunpack.c.l.b16 %v936
        %v995 = vunpack.c.h.b16 %v936
        %v996 = vunpack.c.l.b16 %v937
        %v997 = vunpack.c.h.b16 %v937
        %v998 = vpack.c.b16 %v968, %v966
        %v999 = vpack.c.b16 %v969, %v967
        %v1000 = vpack.c.b16 %v972, %v970
        %v1001 = vpack.c.b16 %v973, %v971
        %v1002 = vpack.c.b16 %v976, %v974
        %v1003 = vpack.c.b16 %v977, %v975
        %v1004 = vpack.c.b16 %v980, %v978
        %v1005 = vpack.c.b16 %v981, %v979
        %v1006 = vpack.c.b16 %v984, %v982
        %v1007 = vpack.c.b16 %v985, %v983
        %v1008 = vpack.c.b16 %v988, %v986
        %v1009 = vpack.c.b16 %v989, %v987
        %v1010 = vpack.c.b16 %v992, %v990
        %v1011 = vpack.c.b16 %v993, %v991
        %v1012 = vpack.c.b16 %v996, %v994
        %v1013 = vpack.c.b16 %v997, %v995
        %1030 = vmatprep.subr.bf16.mxu0 %v1013
        %1031 = vmatpush1.bf16.msra.mxu0 %v1012
        %1032 = vmatprep.subr.bf16.mxu0 %v1011
        %1033 = vmatpush1.bf16.msra.mxu0 %v1010
        %1034 = vmatprep.subr.bf16.mxu0 %v1009
        %1035 = vmatpush1.bf16.msra.mxu0 %v1008
        %1036 = vmatprep.subr.bf16.mxu0 %v1007
        %1037 = vmatpush1.bf16.msra.mxu0 %v1006
        %1038 = vmatprep.subr.bf16.mxu0 %v1005
        %1039 = vmatpush1.bf16.msra.mxu0 %v1004
        %1040 = vmatprep.subr.bf16.mxu0 %v1003
        %1041 = vmatpush1.bf16.msra.mxu0 %v1002
        %1042 = vmatprep.subr.bf16.mxu0 %v1001
        %1043 = vmatpush1.bf16.msra.mxu0 %v1000
        %1044 = vmatprep.subr.bf16.mxu0 %v999
        %1045 = vmatpush1.bf16.msra.mxu0 %v998
        %1046 = vmatprep.subr.bf16.mxu0 0
        %1047 = vmatpush2.bf16.msra.mxu0 0
        %1048 = vmatprep.subr.bf16.mxu0 0
        %1049 = vmatpush2.bf16.msra.mxu0 0
        %1050 = vmatprep.subr.bf16.mxu0 0
        %1051 = vmatpush2.bf16.msra.mxu0 0
        %1052 = vmatprep.subr.bf16.mxu0 0
        %1053 = vmatpush2.bf16.msra.mxu0 0
        %1054 = vmatprep.subr.bf16.mxu0 0
        %1055 = vmatpush2.bf16.msra.mxu0 0
        %1056 = vmatprep.subr.bf16.mxu0 0
        %1057 = vmatpush2.bf16.msra.mxu0 0
        %1058 = vmatprep.subr.bf16.mxu0 0
        %1059 = vmatpush2.bf16.msra.mxu0 0
        %1060 = vmatprep.subr.bf16.mxu0 0
        %1061 = vmatpush2.bf16.msra.mxu0 0
        %1062 = vmatprep.mubr.bf16.mxu0 0
        %1063 = vmatmul.mubr.bf16.gmra.mxu0 %v909
        %v1064 = vpop.f32.mrf.mxu0
        %v1065 = vadd.f32 %v943, %v1064
        %v1066 = vpop.f32.mrf.mxu0
        %v1067 = vadd.f32 %v947, %v1066
        %v1068 = vpop.f32.mrf.mxu0
        %v1069 = vadd.f32 %v943, %v1068
        %v1070 = vpop.f32.mrf.mxu0
        %v1071 = vadd.f32 %v947, %v1070
        %1072 = vmatprep.mubr.bf16.mxu0 0
        %1073 = vmatmul.mubr.bf16.gmra.mxu0 %v910
        %v1074 = vpop.f32.mrf.mxu0
        %v1075 = vadd.f32 %v943, %v1074
        %v1076 = vpop.f32.mrf.mxu0
        %v1077 = vadd.f32 %v947, %v1076
        %v1078 = vpop.f32.mrf.mxu0
        %v1079 = vadd.f32 %v943, %v1078
        %v1080 = vpop.f32.mrf.mxu0
        %v1081 = vadd.f32 %v947, %v1080
        %1082 = vmatprep.mubr.bf16.mxu0 0
        %1083 = vmatmul.mubr.bf16.gmra.mxu0 %v911
        %v1084 = vpop.f32.mrf.mxu0
        %v1085 = vadd.f32 %v943, %v1084
        %v1086 = vpop.f32.mrf.mxu0
        %v1087 = vadd.f32 %v947, %v1086
        %v1088 = vpop.f32.mrf.mxu0
        %v1089 = vadd.f32 %v943, %v1088
        %v1090 = vpop.f32.mrf.mxu0
        %v1091 = vadd.f32 %v947, %v1090
        %1092 = vmatprep.mubr.bf16.mxu0 0
        %1093 = vmatmul.mubr.bf16.gmra.mxu0 %v912
        %v1094 = vpop.f32.mrf.mxu0
        %v1095 = vadd.f32 %v943, %v1094
        %v1096 = vpop.f32.mrf.mxu0
        %v1097 = vadd.f32 %v947, %v1096
        %v1098 = vpop.f32.mrf.mxu0
        %v1099 = vadd.f32 %v943, %v1098
        %v1100 = vpop.f32.mrf.mxu0
        %v1101 = vadd.f32 %v947, %v1100
        %1102 = vmatprep.mubr.bf16.mxu0 0
        %1103 = vmatmul.mubr.bf16.gmra.mxu0 %v913
        %v1104 = vpop.f32.mrf.mxu0
        %v1105 = vadd.f32 %v943, %v1104
        %v1106 = vpop.f32.mrf.mxu0
        %v1107 = vadd.f32 %v947, %v1106
        %v1108 = vpop.f32.mrf.mxu0
        %v1109 = vadd.f32 %v943, %v1108
        %v1110 = vpop.f32.mrf.mxu0
        %v1111 = vadd.f32 %v947, %v1110
        %1112 = vmatprep.mubr.bf16.mxu0 0
        %1113 = vmatmul.mubr.bf16.gmra.mxu0 %v914
        %v1114 = vpop.f32.mrf.mxu0
        %v1115 = vadd.f32 %v943, %v1114
        %v1116 = vpop.f32.mrf.mxu0
        %v1117 = vadd.f32 %v947, %v1116
        %v1118 = vpop.f32.mrf.mxu0
        %v1119 = vadd.f32 %v943, %v1118
        %v1120 = vpop.f32.mrf.mxu0
        %v1121 = vadd.f32 %v947, %v1120
        %1122 = vmatprep.mubr.bf16.mxu0 0
        %1123 = vmatmul.mubr.bf16.gmra.mxu0 %v915
        %v1124 = vpop.f32.mrf.mxu0
        %v1125 = vadd.f32 %v943, %v1124
        %v1126 = vpop.f32.mrf.mxu0
        %v1127 = vadd.f32 %v947, %v1126
        %v1128 = vpop.f32.mrf.mxu0
        %v1129 = vadd.f32 %v943, %v1128
        %v1130 = vpop.f32.mrf.mxu0
        %v1131 = vadd.f32 %v947, %v1130
        %1132 = vmatprep.mubr.bf16.mxu0 0
        %1133 = vmatmul.mubr.bf16.gmra.mxu0 %v916
        %v1134 = vpop.f32.mrf.mxu0
        %v1135 = vadd.f32 %v943, %v1134
        %v1136 = vpop.f32.mrf.mxu0
        %v1137 = vadd.f32 %v947, %v1136
        %v1138 = vpop.f32.mrf.mxu0
        %v1139 = vadd.f32 %v943, %v1138
        %v1140 = vpop.f32.mrf.mxu0
        %v1141 = vadd.f32 %v947, %v1140
        %1142 = vmatprep.mubr.bf16.mxu0 0
        %1143 = vmatmul.mubr.bf16.gmra.mxu0 %v917
        %v1144 = vpop.f32.mrf.mxu0
        %v1145 = vadd.f32 %v943, %v1144
        %v1146 = vpop.f32.mrf.mxu0
        %v1147 = vadd.f32 %v947, %v1146
        %v1148 = vpop.f32.mrf.mxu0
        %v1149 = vadd.f32 %v943, %v1148
        %v1150 = vpop.f32.mrf.mxu0
        %v1151 = vadd.f32 %v947, %v1150
        %1152 = vmatprep.mubr.bf16.mxu0 0
        %1153 = vmatmul.mubr.bf16.gmra.mxu0 %v918
        %v1154 = vpop.f32.mrf.mxu0
        %v1155 = vadd.f32 %v943, %v1154
        %v1156 = vpop.f32.mrf.mxu0
        %v1157 = vadd.f32 %v947, %v1156
        %v1158 = vpop.f32.mrf.mxu0
        %v1159 = vadd.f32 %v943, %v1158
        %v1160 = vpop.f32.mrf.mxu0
        %v1161 = vadd.f32 %v947, %v1160
        %1162 = vmatprep.mubr.bf16.mxu0 0
        %1163 = vmatmul.mubr.bf16.gmra.mxu0 %v919
        %v1164 = vpop.f32.mrf.mxu0
        %v1165 = vadd.f32 %v943, %v1164
        %v1166 = vpop.f32.mrf.mxu0
        %v1167 = vadd.f32 %v947, %v1166
        %v1168 = vpop.f32.mrf.mxu0
        %v1169 = vadd.f32 %v943, %v1168
        %v1170 = vpop.f32.mrf.mxu0
        %v1171 = vadd.f32 %v947, %v1170
        %1172 = vmatprep.mubr.bf16.mxu0 0
        %1173 = vmatmul.mubr.bf16.gmra.mxu0 %v920
        %v1174 = vpop.f32.mrf.mxu0
        %v1175 = vadd.f32 %v943, %v1174
        %v1176 = vpop.f32.mrf.mxu0
        %v1177 = vadd.f32 %v947, %v1176
        %v1178 = vpop.f32.mrf.mxu0
        %v1179 = vadd.f32 %v943, %v1178
        %v1180 = vpop.f32.mrf.mxu0
        %v1181 = vadd.f32 %v947, %v1180
        %1182 = vmatprep.mubr.bf16.mxu0 0
        %1183 = vmatmul.mubr.bf16.gmra.mxu0 %v921
        %v1184 = vpop.f32.mrf.mxu0
        %v1185 = vadd.f32 %v943, %v1184
        %v1186 = vpop.f32.mrf.mxu0
        %v1187 = vadd.f32 %v947, %v1186
        %v1188 = vpop.f32.mrf.mxu0
        %v1189 = vpop.f32.mrf.mxu0
        %1190 = vdwg.mxu0
        %v1191 = vpack.c.bf16 %v1069, %v1065
        %v1192 = vpack.c.bf16 %v1071, %v1067
        %v1193 = vpack.c.bf16 %v1079, %v1075
        %v1194 = vpack.c.bf16 %v1081, %v1077
        %v1195 = vpack.c.bf16 %v1089, %v1085
        %v1196 = vpack.c.bf16 %v1091, %v1087
        %v1197 = vpack.c.bf16 %v1099, %v1095
        %v1198 = vpack.c.bf16 %v1101, %v1097
        %v1199 = vpack.c.bf16 %v1109, %v1105
        %v1200 = vpack.c.bf16 %v1111, %v1107
        %v1201 = vpack.c.bf16 %v1119, %v1115
        %v1202 = vpack.c.bf16 %v1121, %v1117
        %v1203 = vpack.c.bf16 %v1129, %v1125
        %v1204 = vpack.c.bf16 %v1131, %v1127
        %v1205 = vpack.c.bf16 %v1139, %v1135
        %v1206 = vpack.c.bf16 %v1141, %v1137
        %v1207 = vpack.c.bf16 %v1149, %v1145
        %v1208 = vpack.c.bf16 %v1151, %v1147
        %v1209 = vpack.c.bf16 %v1159, %v1155
        %v1210 = vpack.c.bf16 %v1161, %v1157
        %v1211 = vpack.c.bf16 %v1169, %v1165
        %v1212 = vpack.c.bf16 %v1171, %v1167
        %v1213 = vpack.c.bf16 %v1179, %v1175
        %v1214 = vpack.c.bf16 %v1181, %v1177
        %v1215 = vpack.c.bf16 %v1185, %v1185
        %v1216 = vpack.c.bf16 %v1187, %v1187
        %v1243 = vunpack.c.l.b16 %v1191
        %v1244 = vunpack.c.l.b16 %v1192
        %v1245 = vunpack.c.h.b16 %v1191
        %v1246 = vunpack.c.h.b16 %v1192
        %v1247 = vunpack.c.l.b16 %v1193
        %v1248 = vunpack.c.l.b16 %v1194
        %v1249 = vunpack.c.h.b16 %v1193
        %v1250 = vunpack.c.h.b16 %v1194
        %v1251 = vunpack.c.l.b16 %v1195
        %v1252 = vunpack.c.l.b16 %v1196
        %v1253 = vunpack.c.h.b16 %v1195
        %v1254 = vunpack.c.h.b16 %v1196
        %v1255 = vunpack.c.l.b16 %v1197
        %v1256 = vunpack.c.l.b16 %v1198
        %v1257 = vunpack.c.h.b16 %v1197
        %v1258 = vunpack.c.h.b16 %v1198
        %v1259 = vunpack.c.l.b16 %v1199
        %v1260 = vunpack.c.l.b16 %v1200
        %v1261 = vunpack.c.h.b16 %v1199
        %v1262 = vunpack.c.h.b16 %v1200
        %v1263 = vunpack.c.l.b16 %v1201
        %v1264 = vunpack.c.l.b16 %v1202
        %v1265 = vunpack.c.h.b16 %v1201
        %v1266 = vunpack.c.h.b16 %v1202
        %v1267 = vunpack.c.l.b16 %v1203
        %v1268 = vunpack.c.l.b16 %v1204
        %v1269 = vunpack.c.h.b16 %v1203
        %v1270 = vunpack.c.h.b16 %v1204
        %v1271 = vunpack.c.l.b16 %v1205
        %v1272 = vunpack.c.l.b16 %v1206
        %v1273 = vunpack.c.h.b16 %v1205
        %v1274 = vunpack.c.h.b16 %v1206
        %v1275 = vunpack.c.l.b16 %v1207
        %v1276 = vunpack.c.l.b16 %v1208
        %v1277 = vunpack.c.h.b16 %v1207
        %v1278 = vunpack.c.h.b16 %v1208
        %v1279 = vunpack.c.l.b16 %v1209
        %v1280 = vunpack.c.l.b16 %v1210
        %v1281 = vunpack.c.h.b16 %v1209
        %v1282 = vunpack.c.h.b16 %v1210
        %v1283 = vunpack.c.l.b16 %v1211
        %v1284 = vunpack.c.l.b16 %v1212
        %v1285 = vunpack.c.h.b16 %v1211
        %v1286 = vunpack.c.h.b16 %v1212
        %v1287 = vunpack.c.l.b16 %v1213
        %v1288 = vunpack.c.l.b16 %v1214
        %v1289 = vunpack.c.h.b16 %v1213
        %v1290 = vunpack.c.h.b16 %v1214
        %v1291 = vunpack.c.l.b16 %v1215
        %v1292 = vunpack.c.l.b16 %v1216
        %v1293 = vpack.c.b16 %v1244, %v1243
        %v1294 = vpack.c.b16 %v1246, %v1245
        %v1295 = vpack.c.b16 %v1248, %v1247
        %v1296 = vpack.c.b16 %v1250, %v1249
        %v1297 = vpack.c.b16 %v1252, %v1251
        %v1298 = vpack.c.b16 %v1254, %v1253
        %v1299 = vpack.c.b16 %v1256, %v1255
        %v1300 = vpack.c.b16 %v1258, %v1257
        %v1301 = vpack.c.b16 %v1260, %v1259
        %v1302 = vpack.c.b16 %v1262, %v1261
        %v1303 = vpack.c.b16 %v1264, %v1263
        %v1304 = vpack.c.b16 %v1266, %v1265
        %v1305 = vpack.c.b16 %v1268, %v1267
        %v1306 = vpack.c.b16 %v1270, %v1269
        %v1307 = vpack.c.b16 %v1272, %v1271
        %v1308 = vpack.c.b16 %v1274, %v1273
        %v1309 = vpack.c.b16 %v1276, %v1275
        %v1310 = vpack.c.b16 %v1278, %v1277
        %v1311 = vpack.c.b16 %v1280, %v1279
        %v1312 = vpack.c.b16 %v1282, %v1281
        %v1313 = vpack.c.b16 %v1284, %v1283
        %v1314 = vpack.c.b16 %v1286, %v1285
        %v1315 = vpack.c.b16 %v1288, %v1287
        %v1316 = vpack.c.b16 %v1290, %v1289
        %v1317 = vpack.c.b16 %v1292, %v1291
        %1343 = vst [vmem:[%s373] sm:$0xff] %v1293
        %1344 = vst [vmem:[%s373 + $0x8] sm:$0xff] %v1294
        %1345 = vst [vmem:[%s373 + $0x10] sm:$0xff] %v1295
        %1346 = vst [vmem:[%s373 + $0x18] sm:$0xff] %v1296
        %1347 = vst [vmem:[%s373 + $0x20] sm:$0xff] %v1297
        %1348 = vst [vmem:[%s373 + $0x28] sm:$0xff] %v1298
        %1349 = vst [vmem:[%s373 + $0x30] sm:$0xff] %v1299
        %1350 = vst [vmem:[%s373 + $0x38] sm:$0xff] %v1300
        %1351 = vst [vmem:[%s373 + $0x40] sm:$0xff] %v1301
        %1352 = vst [vmem:[%s373 + $0x48] sm:$0xff] %v1302
        %1353 = vst [vmem:[%s373 + $0x50] sm:$0xff] %v1303
        %1354 = vst [vmem:[%s373 + $0x58] sm:$0xff] %v1304
        %1355 = vst [vmem:[%s373 + $0x60] sm:$0xff] %v1305
        %1356 = vst [vmem:[%s373 + $0x68] sm:$0xff] %v1306
        %1357 = vst [vmem:[%s373 + $0x70] sm:$0xff] %v1307
        %1358 = vst [vmem:[%s373 + $0x78] sm:$0xff] %v1308
        %1359 = vst [vmem:[%s373 + $0x80] sm:$0xff] %v1309
        %1360 = vst [vmem:[%s373 + $0x88] sm:$0xff] %v1310
        %1361 = vst [vmem:[%s373 + $0x90] sm:$0xff] %v1311
        %1362 = vst [vmem:[%s373 + $0x98] sm:$0xff] %v1312
        %1363 = vst [vmem:[%s373 + $0xa0] sm:$0xff] %v1313
        %1364 = vst [vmem:[%s373 + $0xa8] sm:$0xff] %v1314
        %1365 = vst [vmem:[%s373 + $0xb0] sm:$0xff] %v1315
        %1366 = vst [vmem:[%s373 + $0xb8] sm:$0xff] %v1316
        %1367 = vst [vmem:[%s373 + $0xc0] sm:$0xff] %v1317
        %v1368 = vmax.f32 %v1065, %v1075
        %v1369 = vmax.f32 %v1069, %v1079
        %v1370 = vmax.f32 %v1368, %v1085
        %v1371 = vmax.f32 %v1369, %v1089
        %v1372 = vmax.f32 %v1370, %v1095
        %v1373 = vmax.f32 %v1371, %v1099
        %v1374 = vmax.f32 %v1372, %v1105
        %v1375 = vmax.f32 %v1373, %v1109
        %v1376 = vmax.f32 %v1374, %v1115
        %v1377 = vmax.f32 %v1375, %v1119
        %v1378 = vmax.f32 %v1376, %v1125
        %v1379 = vmax.f32 %v1377, %v1129
        %v1380 = vmax.f32 %v1378, %v1135
        %v1381 = vmax.f32 %v1379, %v1139
        %v1382 = vmax.f32 %v1380, %v1145
        %v1383 = vmax.f32 %v1381, %v1149
        %v1384 = vmax.f32 %v1382, %v1155
        %v1385 = vmax.f32 %v1383, %v1159
        %v1386 = vmax.f32 %v1384, %v1165
        %v1387 = vmax.f32 %v1385, %v1169
        %v1388 = vmax.f32 %v1386, %v1175
        %v1389 = vmax.f32 %v1387, %v1179
        %v1390 = vmax.f32 %v1388, %v1185
        %v1391 = vmax.f32 %v1390, %v1389
        %v1392 = vrot.slane %v1391, 4
        %v1393 = vmax.f32 %v1391, %v1392
        %v1394 = vrot.slane %v1393, 2
        %v1395 = vmax.f32 %v1393, %v1394
        %v1396 = vrot.slane %v1395, 1
        %v1397 = vmax.f32 %v1395, %v1396
        %v1398 = vmax.f32 %v1067, %v1077
        %v1399 = vmax.f32 %v1071, %v1081
        %v1400 = vmax.f32 %v1398, %v1087
        %v1401 = vmax.f32 %v1399, %v1091
        %v1402 = vmax.f32 %v1400, %v1097
        %v1403 = vmax.f32 %v1401, %v1101
        %v1404 = vmax.f32 %v1402, %v1107
        %v1405 = vmax.f32 %v1403, %v1111
        %v1406 = vmax.f32 %v1404, %v1117
        %v1407 = vmax.f32 %v1405, %v1121
        %v1408 = vmax.f32 %v1406, %v1127
        %v1409 = vmax.f32 %v1407, %v1131
        %v1410 = vmax.f32 %v1408, %v1137
        %v1411 = vmax.f32 %v1409, %v1141
        %v1412 = vmax.f32 %v1410, %v1147
        %v1413 = vmax.f32 %v1411, %v1151
        %v1414 = vmax.f32 %v1412, %v1157
        %v1415 = vmax.f32 %v1413, %v1161
        %v1416 = vmax.f32 %v1414, %v1167
        %v1417 = vmax.f32 %v1415, %v1171
        %v1418 = vmax.f32 %v1416, %v1177
        %v1419 = vmax.f32 %v1417, %v1181
        %v1420 = vmax.f32 %v1418, %v1187
        %v1421 = vmax.f32 %v1420, %v1419
        %v1422 = vrot.slane %v1421, 4
        %v1423 = vmax.f32 %v1421, %v1422
        %v1424 = vrot.slane %v1423, 2
        %v1425 = vmax.f32 %v1423, %v1424
        %v1426 = vrot.slane %v1425, 1
        %v1427 = vmax.f32 %v1425, %v1426
        %p1428 = scmp.eq.s32.totalorder %s35, 0
        // Predicated region
        $region57: #{tpu_custom_call.1} parent=47 // pred_check
          %p1429 = pneg %p1428
        $region58: #{tpu_custom_call.1} parent=47 // pred_check_branch
          %1431 = sbr.rel (%p1429) target = $region60
        $region59: #{tpu_custom_call.1} parent=47 // pred_region
          %v1434 = vcombine.low %v1397, %v1427
          %v1436 = vunpack.c.l.s4 1966171168
          %v1437 = vunpack.c.0.s8 %v1436
          %v1438 = vlaneseq
          %v1439 = vshrl.u32 %v1438, 7
          %v1440 = vsub.s32 %v1437, %v1439
          %v1441 = vrot.slane %v1434, %v1440
          %v1443 = vunpack.c.l.s4 1966171168
          %v1444 = vunpack.c.0.s8 %v1443
          %v1445 = vlaneseq
          %v1446 = vshrl.u32 %v1445, 7
          %v1447 = vsub.s32 %v1444, %v1446
          %v1448 = vrot.slane %v1441, %v1447
          %v1450 = vlaneseq
          %vm1451 = vcmp.ge.s32.totalorder %v1450, 0
          %vm1452 = vcmp.lt.s32.totalorder %v1450, 256
          %vm1453 = vmand %vm1451, %vm1452
          %1454 = vst.msk [vmem:[%s380] sm:$0x3] %vm1453, %v1448
        $region60: #{tpu_custom_call.1} parent=47 // pred_fallthru
          _
        %p1455 = scmp.ne.s32.totalorder %s35, 0
        // Predicated region
        $region61: #{tpu_custom_call.1} parent=47 // pred_check
          %p1456 = pneg %p1455
        $region62: #{tpu_custom_call.1} parent=47 // pred_check_branch
          %1458 = sbr.rel (%p1456) target = $region64
        $region63: #{tpu_custom_call.1} parent=47 // pred_region
          %v1459 = vld [vmem:[%s380] sm:$0x3]
          %v1462 = vcombine.low %v1397, %v1427
          %v1464 = vunpack.c.l.s4 1966171168
          %v1465 = vunpack.c.0.s8 %v1464
          %v1466 = vlaneseq
          %v1467 = vshrl.u32 %v1466, 7
          %v1468 = vsub.s32 %v1465, %v1467
          %v1469 = vrot.slane %v1462, %v1468
          %v1471 = vunpack.c.l.s4 1966171168
          %v1472 = vunpack.c.0.s8 %v1471
          %v1473 = vlaneseq
          %v1474 = vshrl.u32 %v1473, 7
          %v1475 = vsub.s32 %v1472, %v1474
          %v1476 = vrot.slane %v1469, %v1475
          %v1478 = vmax.f32 %v1459, %v1476
          %v1479 = vlaneseq
          %vm1480 = vcmp.ge.s32.totalorder %v1479, 0
          %vm1481 = vcmp.lt.s32.totalorder %v1479, 256
          %vm1482 = vmand %vm1480, %vm1481
          %1483 = vst.msk [vmem:[%s380] sm:$0x3] %vm1482, %v1478
        $region64: #{tpu_custom_call.1} parent=47 // pred_fallthru
          _
        %s1484 = sand.u32 %s215, 1
        %s1485 = scalar_lea.sflag [#allocation4], %s1484
        %s1486 = sand.u32 %s215, 1
        %s1487 = smul.addr %s1486, 200
        %s1488 = scalar_lea.vmem [#allocation7], %s1487
        %s1489 = sand.u32 %s243, 1
        %s1490 = scalar_lea.sflag [#allocation9], %s1489
        %s1491 = sand.u32 %s243, 1
        %s1492 = smul.addr %s1491, 2
        %s1493 = scalar_lea.vmem [#allocation8], %s1492
        // Predicated region
        $region65: #{tpu_custom_call.1} parent=47 // pred_check
          %p1494 = pneg %p225
        $region66: #{tpu_custom_call.1} parent=47 // pred_check_branch
          %1496 = sbr.rel (%p1494) target = $region68
        $region67: #{tpu_custom_call.1} parent=47 // pred_region
          %s1497 = sadd.s32 %s34, %s35
          %s1498 = smul.u32 25, %s1497
          %s1500 = ssub.s32 3200, 3200
          %1501 = vsyncadd %s1485, %s1500
          %s1502 = smul.addr %s1498, 2
          %s1503 = smul.addr %s33, 50
          %s1504 = sadd.s32 %s1502, %s1503
          %s1505 = smul.addr %s1504, 64
          %s1506 = scalar_lea.hbm %s7, %s1505
          %s1507 = sshll.u32 %s1488, 4
          %s1508 = int_to_ptr.vmem [resolvable:$true] %s1507
          %1513 = dma.vmem_to_hbm [thread:$0]  %s1508, 3200, %s1506, %s1485, 128, 128, 8
        $region68: #{tpu_custom_call.1} parent=47 // pred_fallthru
          _
        // Predicated region
        $region69: #{tpu_custom_call.1} parent=47 // pred_check
          %p1514 = pneg %p253
        $region70: #{tpu_custom_call.1} parent=47 // pred_check_branch
          %1516 = sbr.rel (%p1514) target = $region72
        $region71: #{tpu_custom_call.1} parent=47 // pred_region
          %s1518 = ssub.s32 32, 32
          %1519 = vsyncadd %s1490, %s1518
          %s1520 = smul.addr %s34, 2
          %s1521 = smul.addr %s33, 2
          %s1522 = sadd.s32 %s1520, %s1521
          %s1523 = smul.addr %s1522, 16
          %s1524 = scalar_lea.hbm %s8, %s1523
          %s1526 = sshll.u32 %s1493, 4
          %s1527 = int_to_ptr.vmem [resolvable:$true] %s1526
          %1529 = dma.vmem_to_hbm [thread:$0]  %s1527, 32, %s1524, %s1490
        $region72: #{tpu_custom_call.1} parent=47 // pred_fallthru
          _
      $region48: #{tpu_custom_call.1} parent=5 // pred_fallthru
        _
      %p1530 = scmp.le.s32.totalorder 2, %s23
      // Predicated region
      $region73: #{tpu_custom_call.1} parent=5 // pred_check
        %p1531 = pneg %p1530
      $region74: #{tpu_custom_call.1} parent=5 // pred_check_branch
        %1533 = sbr.rel (%p1531) target = $region76
      $region75: #{tpu_custom_call.1} parent=5 // pred_region
        %s1534 = ssub.s32 %s23, 2
        // Predicated region
        $region77: #{tpu_custom_call.1} parent=75 // pred_check
          %p1535 = pneg %p231
        $region78: #{tpu_custom_call.1} parent=75 // pred_check_branch
          %1537 = sbr.rel (%p1535) target = $region80
        $region79: #{tpu_custom_call.1} parent=75 // pred_region
          %s1538 = sand.u32 %s216, 1
          %s1539 = scalar_lea.sflag [#allocation4], %s1538
          %s1540 = sand.u32 %s216, 1
          %s1541 = smul.addr %s1540, 200
          %s1542 = scalar_lea.vmem [#allocation7], %s1541
          %1543 = dma.done %s1539, 3200
        $region80: #{tpu_custom_call.1} parent=75 // pred_fallthru
          _
        // Predicated region
        $region81: #{tpu_custom_call.1} parent=75 // pred_check
          %p1544 = pneg %p259
        $region82: #{tpu_custom_call.1} parent=75 // pred_check_branch
          %1546 = sbr.rel (%p1544) target = $region84
        $region83: #{tpu_custom_call.1} parent=75 // pred_region
          %s1547 = sand.u32 %s244, 1
          %s1548 = scalar_lea.sflag [#allocation9], %s1547
          %s1549 = sand.u32 %s244, 1
          %s1550 = smul.addr %s1549, 2
          %s1551 = scalar_lea.vmem [#allocation8], %s1550
          %1552 = dma.done %s1548, 32
        $region84: #{tpu_custom_call.1} parent=75 // pred_fallthru
          _
      $region76: #{tpu_custom_call.1} parent=5 // pred_fallthru
        _
    $region6: #{tpu_custom_call.1} parent=1 // loop_footer
      %s27 = sadd.s32 1, %s23
    $region7: #{tpu_custom_call.1} parent=1 // loop_footer_branch
      %22 = sbr.rel target = $region3
    $region8: #{tpu_custom_call.1} parent=1 // loop_exit
      _
    %1553 = vsyncpa [#allocation3], 1
    %s1554 = scalar_lea.sflag [#allocation3], 1
    %1555 = vsyncpa %s1554, 1
    %1556 = vsyncpa [#allocation6], 1
    %1557 = vsyncpa [#allocation4], 1
    %s1558 = scalar_lea.sflag [#allocation4], 1
    %1559 = vsyncpa %s1558, 1
    %1560 = vsyncpa [#allocation9], 1
    %s1561 = scalar_lea.sflag [#allocation9], 1
    %1562 = vsyncpa %s1561, 1

</llo_original>
